<compile_context>
chip_gen: v7x
topology: tpu7x:2x2x1
jax: 0.10.0
libtpu: 0.0.40
codegen_flags: <defaults>
</compile_context>

<pallas_src>
import jax
import jax.numpy as jnp
from jax import lax
from jax.experimental import pallas as pl
from jax.experimental.pallas import tpu as pltpu

# ---- synthetic CLIP-text config (small) --------------------------------------
B = 2          # batch (number of prompts)
L = 8          # context length (n_ctx)
D = 32         # transformer width
H = 4          # attention heads
HD = D // H    # head dim
MLP = 4 * D    # mlp hidden
PROJ = 32      # text_projection output dim
NLAYER = 2     # transformer layers
EPS = 1e-5
NEG = -1e9     # causal-mask fill (CLIP uses -inf; -1e9 is numerically safe)


def _ln(x, g, b):
    mu = jnp.mean(x, axis=-1, keepdims=True)
    var = jnp.mean((x - mu) ** 2, axis=-1, keepdims=True)
    return (x - mu) * lax.rsqrt(var + EPS) * g + b


# ---- fused kernel: add_pos -> NLAYER blocks -> EOT gather -> ln_final -> proj --
def fused_kernel(eot_ref,                                   # scalar prefetch (SMEM)
                 prompts_ref, pos_ref, mask_ref,            # constants
                 ln1g_ref, ln1b_ref, wqkv_ref, bqkv_ref, wo_ref, bo_ref,
                 ln2g_ref, ln2b_ref, w1_ref, b1_ref, w2_ref, b2_ref,  # streamed / layer
                 lnfg_ref, lnfb_ref, proj_ref,               # final params
                 o_ref,                                      # (B, PROJ) output
                 x_scr):                                     # (B*L, D) resident activation
    layer = pl.program_id(0)

    # ---- prologue: x = prompts + positional_embedding (first grid step only) --
    @pl.when(layer == 0)
    def _():
        x_scr[...] = prompts_ref[...] + pos_ref[...]

    x = x_scr[...]                                           # (B*L, D)

    # ---- ResidualAttentionBlock: ln1 -> MHA -> +res -> ln2 -> MLP -> +res ----
    h = _ln(x, ln1g_ref[...], ln1b_ref[...])
    qkv = jnp.dot(h, wqkv_ref[...], preferred_element_type=jnp.float32) + bqkv_ref[...]
    q = qkv[:, 0:D]
    k = qkv[:, D:2 * D]
    v = qkv[:, 2 * D:3 * D]

    wo = wo_ref[...]
    mask = mask_ref[...]                                     # (B*L, B*L) block-diag causal
    scale = 1.0 / (HD ** 0.5)

    attn = jnp.zeros((B * L, D), jnp.float32)
    for hh in range(H):                                      # small static head loop
        lo, hi = hh * HD, (hh + 1) * HD
        qh = q[:, lo:hi]
        kh = k[:, lo:hi]
        vh = v[:, lo:hi]
        s = lax.dot_general(qh, kh, (((1,), (1,)), ((), ())),
                            preferred_element_type=jnp.float32) * scale + mask
        s = s - jnp.max(s, axis=-1, keepdims=True)
        p = jnp.exp(s)
        p = p * pl.reciprocal(jnp.sum(p, axis=-1, keepdims=True), approx=True)
        oh = jnp.dot(p, vh, preferred_element_type=jnp.float32)          # (B*L, HD)
        # fold the head-concat into the out-projection (no lane shuffle):
        attn = attn + jnp.dot(oh, wo[lo:hi, :], preferred_element_type=jnp.float32)
    x = x + attn + bo_ref[...]

    h2 = _ln(x, ln2g_ref[...], ln2b_ref[...])
    m = jnp.dot(h2, w1_ref[...], preferred_element_type=jnp.float32) + b1_ref[...]
    m = m * jax.nn.sigmoid(1.702 * m)                        # QuickGELU (CLIP)
    m = jnp.dot(m, w2_ref[...], preferred_element_type=jnp.float32) + b2_ref[...]
    x = x + m
    x_scr[...] = x

    # ---- epilogue: gather EOT token, ln_final, @ text_projection --------------
    @pl.when(layer == pl.num_programs(0) - 1)
    def _():
        rows = [x_scr[pl.ds(b * L + eot_ref[b], 1), :] for b in range(B)]  # (1, D) each
        xsel = jnp.concatenate(rows, axis=0)                 # (B, D)
        hsel = _ln(xsel, lnfg_ref[...], lnfb_ref[...])
        o_ref[...] = jnp.dot(hsel, proj_ref[...], preferred_element_type=jnp.float32)


# ---- wrapper -------------------------------------------------------------------
def text_encoder_forward(prompts, tokenized_prompts, w):
    # EOT positions (argmax over token ids) -> scalar prefetch
    eot = jnp.argmax(tokenized_prompts, axis=-1).astype(jnp.int32)       # (B,)

    prompts_flat = prompts.reshape(B * L, D)
    pos_tiled = jnp.tile(w["pos"], (B, 1))                               # (B*L, D)

    # block-diagonal causal mask over the flattened (B*L) sequence
    rb = jnp.arange(B * L) // L
    rl = jnp.arange(B * L) % L
    allowed = (rb[:, None] == rb[None, :]) & (rl[None, :] <= rl[:, None])
    mask_bd = jnp.where(allowed, 0.0, NEG).astype(jnp.float32)           # (B*L, B*L)

    const2d = lambda shape: pl.BlockSpec(shape, lambda l, e: (0, 0))
    layer3d = lambda shape: pl.BlockSpec((None,) + shape, lambda l, e: (l, 0, 0))

    grid_spec = pltpu.PrefetchScalarGridSpec(
        num_scalar_prefetch=1,
        grid=(NLAYER,),
        in_specs=[
            const2d((B * L, D)),          # prompts (flattened)
            const2d((B * L, D)),          # positional embedding (tiled)
            const2d((B * L, B * L)),      # block-diag causal mask
            layer3d((1, D)),              # ln1_g
            layer3d((1, D)),              # ln1_b
            layer3d((D, 3 * D)),          # w_qkv
            layer3d((1, 3 * D)),          # b_qkv
            layer3d((D, D)),              # w_o
            layer3d((1, D)),              # b_o
            layer3d((1, D)),              # ln2_g
            layer3d((1, D)),              # ln2_b
            layer3d((D, MLP)),            # w_1
            layer3d((1, MLP)),            # b_1
            layer3d((MLP, D)),            # w_2
            layer3d((1, D)),              # b_2
            const2d((1, D)),              # lnf_g
            const2d((1, D)),              # lnf_b
            const2d((D, PROJ)),           # text_projection
        ],
        out_specs=pl.BlockSpec((B, PROJ), lambda l, e: (0, 0)),
        scratch_shapes=[pltpu.VMEM((B * L, D), jnp.float32)],
    )

    return pl.pallas_call(
        fused_kernel,
        out_shape=jax.ShapeDtypeStruct((B, PROJ), jnp.float32),
        grid_spec=grid_spec,
        compiler_params=pltpu.CompilerParams(dimension_semantics=("arbitrary",)),
    )(eot, prompts_flat, pos_tiled, mask_bd,
      w["ln1_g"], w["ln1_b"], w["w_qkv"], w["b_qkv"], w["w_o"], w["b_o"],
      w["ln2_g"], w["ln2_b"], w["w_1"], w["b_1"], w["w_2"], w["b_2"],
      w["lnf_g"], w["lnf_b"], w["proj"])


# ---- deterministic parameter init (per-layer tensors stacked on a leading axis) --
def init_weights(key):
    def nrm(k, shape, s=0.02):
        return jax.random.normal(k, shape, jnp.float32) * s

    ks = jax.random.split(key, 16)
    return dict(
        pos=nrm(ks[0], (L, D), 0.01),
        proj=nrm(ks[1], (D, PROJ), D ** -0.5),
        lnf_g=1.0 + nrm(ks[2], (1, D), 0.1),
        lnf_b=nrm(ks[3], (1, D), 0.1),
        ln1_g=1.0 + nrm(ks[4], (NLAYER, 1, D), 0.1),
        ln1_b=nrm(ks[5], (NLAYER, 1, D), 0.1),
        w_qkv=nrm(ks[6], (NLAYER, D, 3 * D)),
        b_qkv=nrm(ks[7], (NLAYER, 1, 3 * D)),
        w_o=nrm(ks[8], (NLAYER, D, D)),
        b_o=nrm(ks[9], (NLAYER, 1, D)),
        ln2_g=1.0 + nrm(ks[10], (NLAYER, 1, D), 0.1),
        ln2_b=nrm(ks[11], (NLAYER, 1, D), 0.1),
        w_1=nrm(ks[12], (NLAYER, D, MLP)),
        b_1=nrm(ks[13], (NLAYER, 1, MLP)),
        w_2=nrm(ks[14], (NLAYER, MLP, D)),
        b_2=nrm(ks[15], (NLAYER, 1, D)),
    )


# ---- pure-JAX reference (mirrors the PyTorch forward) ---------------------------
def ref_forward(prompts, tokenized, w):
    x = prompts + w["pos"][None]                                         # (B, L, D)
    causal = jnp.where(jnp.triu(jnp.ones((L, L), jnp.bool_), 1), NEG, 0.0)
    for l in range(NLAYER):
        h = _ln(x, w["ln1_g"][l, 0], w["ln1_b"][l, 0])
        qkv = h @ w["w_qkv"][l] + w["b_qkv"][l, 0]
        q, k, v = qkv[..., :D], qkv[..., D:2 * D], qkv[..., 2 * D:]
        q = q.reshape(B, L, H, HD).transpose(0, 2, 1, 3)
        k = k.reshape(B, L, H, HD).transpose(0, 2, 1, 3)
        v = v.reshape(B, L, H, HD).transpose(0, 2, 1, 3)
        s = jnp.einsum("bhld,bhmd->bhlm", q, k) / (HD ** 0.5) + causal
        p = jax.nn.softmax(s, axis=-1)
        o = jnp.einsum("bhlm,bhmd->bhld", p, v).transpose(0, 2, 1, 3).reshape(B, L, D)
        x = x + o @ w["w_o"][l] + w["b_o"][l, 0]
        h2 = _ln(x, w["ln2_g"][l, 0], w["ln2_b"][l, 0])
        m = h2 @ w["w_1"][l] + w["b_1"][l, 0]
        m = m * jax.nn.sigmoid(1.702 * m)
        x = x + m @ w["w_2"][l] + w["b_2"][l, 0]
    eot = jnp.argmax(tokenized, axis=-1)
    xs = x[jnp.arange(B), eot]
    return _ln(xs, w["lnf_g"][0], w["lnf_b"][0]) @ w["proj"]


if __name__ == "__main__":
    key = jax.random.PRNGKey(0)
    k_w, k_p = jax.random.split(key)
    weights = init_weights(k_w)

    # prompts: learned-context embeddings (B, L, D)
    prompts = jax.random.normal(k_p, (B, L, D), jnp.float32) * 0.02
    # tokenized_prompts: int tokens; EOT (largest id) at positions 5 and 7
    tokenized = jnp.array(
        [[49406, 320, 1125, 539, 1929, 49407, 0, 0],
         [49406, 320, 1125, 539, 320, 2368, 1929, 49407]], dtype=jnp.int32)

    out = text_encoder_forward(prompts, tokenized, weights)
    jax.block_until_ready(out)
    assert out.shape == (B, PROJ) and out.dtype == jnp.float32

    with jax.default_matmul_precision("float32"):
        ref = ref_forward(prompts, tokenized, weights)
    err = float(jnp.max(jnp.abs(out - ref)))
    assert err < 5e-2, f"max abs error vs reference: {err}"

    print("KERNEL_OK")
</pallas_src>

<mosaic_0001>
module attributes {stable_mosaic.version = 11 : i64} {
  func.func @fused_kernel(%arg0: i32, %arg1: memref<2xi32, #tpu.memory_space<smem>>, %arg2: memref<16x32xf32, #tpu.memory_space<vmem>>, %arg3: memref<16x32xf32, #tpu.memory_space<vmem>>, %arg4: memref<16x16xf32, #tpu.memory_space<vmem>>, %arg5: memref<1x1x32xf32, #tpu.memory_space<vmem>>, %arg6: memref<1x1x32xf32, #tpu.memory_space<vmem>>, %arg7: memref<1x32x96xf32, #tpu.memory_space<vmem>>, %arg8: memref<1x1x96xf32, #tpu.memory_space<vmem>>, %arg9: memref<1x32x32xf32, #tpu.memory_space<vmem>>, %arg10: memref<1x1x32xf32, #tpu.memory_space<vmem>>, %arg11: memref<1x1x32xf32, #tpu.memory_space<vmem>>, %arg12: memref<1x1x32xf32, #tpu.memory_space<vmem>>, %arg13: memref<1x32x128xf32, #tpu.memory_space<vmem>>, %arg14: memref<1x1x128xf32, #tpu.memory_space<vmem>>, %arg15: memref<1x128x32xf32, #tpu.memory_space<vmem>>, %arg16: memref<1x1x32xf32, #tpu.memory_space<vmem>>, %arg17: memref<1x32xf32, #tpu.memory_space<vmem>>, %arg18: memref<1x32xf32, #tpu.memory_space<vmem>>, %arg19: memref<32x32xf32, #tpu.memory_space<vmem>>, %arg20: memref<2x32xf32, #tpu.memory_space<vmem>>, %arg21: memref<16x32xf32, #tpu.memory_space<vmem>>) attributes {dimension_semantics = [#tpu.dimension_semantics<arbitrary>], iteration_bounds = array<i64: 2>, scalar_prefetch = 1 : i64, scratch_operands = 1 : i64, tpu.core_type = #tpu.core_type<tc>, window_params = [{pipeline_mode = #tpu.pipeline_mode<synchronous>, transform_indices = @transform_0, window_bounds = array<i64: 16, 32>}, {pipeline_mode = #tpu.pipeline_mode<synchronous>, transform_indices = @transform_1, window_bounds = array<i64: 16, 32>}, {pipeline_mode = #tpu.pipeline_mode<synchronous>, transform_indices = @transform_2, window_bounds = array<i64: 16, 16>}, {transform_indices = @transform_3, window_bounds = array<i64: 1, 1, 32>}, {transform_indices = @transform_4, window_bounds = array<i64: 1, 1, 32>}, {transform_indices = @transform_5, window_bounds = array<i64: 1, 32, 96>}, {transform_indices = @transform_6, window_bounds = array<i64: 1, 1, 96>}, {transform_indices = @transform_7, window_bounds = array<i64: 1, 32, 32>}, {transform_indices = @transform_8, window_bounds = array<i64: 1, 1, 32>}, {transform_indices = @transform_9, window_bounds = array<i64: 1, 1, 32>}, {transform_indices = @transform_10, window_bounds = array<i64: 1, 1, 32>}, {transform_indices = @transform_11, window_bounds = array<i64: 1, 32, 128>}, {transform_indices = @transform_12, window_bounds = array<i64: 1, 1, 128>}, {transform_indices = @transform_13, window_bounds = array<i64: 1, 128, 32>}, {transform_indices = @transform_14, window_bounds = array<i64: 1, 1, 32>}, {pipeline_mode = #tpu.pipeline_mode<synchronous>, transform_indices = @transform_15, window_bounds = array<i64: 1, 32>}, {pipeline_mode = #tpu.pipeline_mode<synchronous>, transform_indices = @transform_16, window_bounds = array<i64: 1, 32>}, {pipeline_mode = #tpu.pipeline_mode<synchronous>, transform_indices = @transform_17, window_bounds = array<i64: 32, 32>}, {pipeline_mode = #tpu.pipeline_mode<synchronous>, transform_indices = @transform_18, window_bounds = array<i64: 2, 32>}]} {
    %c0_i32 = arith.constant 0 : i32
    %0 = arith.cmpi eq, %arg0, %c0_i32 : i32
    %1 = arith.extui %0 : i1 to i32
    %c0_i32_0 = arith.constant 0 : i32
    %2 = arith.cmpi ne, %1, %c0_i32_0 : i32
    scf.if %2 {
      %c0_82 = arith.constant 0 : index
      %c0_83 = arith.constant 0 : index
      %186 = vector.load %arg2[%c0_82, %c0_83] : memref<16x32xf32, #tpu.memory_space<vmem>>, vector<16x32xf32>
      %c0_84 = arith.constant 0 : index
      %c0_85 = arith.constant 0 : index
      %187 = vector.load %arg3[%c0_84, %c0_85] : memref<16x32xf32, #tpu.memory_space<vmem>>, vector<16x32xf32>
      %188 = arith.addf %186, %187 : vector<16x32xf32>
      %c0_86 = arith.constant 0 : index
      %c0_87 = arith.constant 0 : index
      %189 = vector.load %arg21[%c0_86, %c0_87] : memref<16x32xf32, #tpu.memory_space<vmem>>, vector<16x32xf32>
      tpu.vector_store %arg21[%c0_86, %c0_87], %188 {strides = array<i32>} : memref<16x32xf32, #tpu.memory_space<vmem>>, vector<16x32xf32>,
    } else {
    }
    %c0 = arith.constant 0 : index
    %c0_1 = arith.constant 0 : index
    %3 = vector.load %arg21[%c0, %c0_1] : memref<16x32xf32, #tpu.memory_space<vmem>>, vector<16x32xf32>
    %c0_2 = arith.constant 0 : index
    %c0_3 = arith.constant 0 : index
    %c0_4 = arith.constant 0 : index
    %4 = vector.load %arg5[%c0_2, %c0_3, %c0_4] : memref<1x1x32xf32, #tpu.memory_space<vmem>>, vector<1x1x32xf32>
    %5 = vector.shape_cast %4 : vector<1x1x32xf32> to vector<1x32xf32>
    %c0_5 = arith.constant 0 : index
    %c0_6 = arith.constant 0 : index
    %c0_7 = arith.constant 0 : index
    %6 = vector.load %arg6[%c0_5, %c0_6, %c0_7] : memref<1x1x32xf32, #tpu.memory_space<vmem>>, vector<1x1x32xf32>
    %7 = vector.shape_cast %6 : vector<1x1x32xf32> to vector<1x32xf32>
    %cst = arith.constant dense<0.000000e+00> : vector<16xf32>
    %8 = vector.multi_reduction <add>, %3, %cst [1] : vector<16x32xf32> to vector<16xf32>
    %9 = vector.shape_cast %8 : vector<16xf32> to vector<16x1xf32>
    %cst_8 = arith.constant 3.200000e+01 : f32
    %10 = vector.broadcast %cst_8 : f32 to vector<16x1xf32>
    %11 = arith.divf %9, %10 : vector<16x1xf32>
    %12 = vector.broadcast %11 : vector<16x1xf32> to vector<16x32xf32>
    %13 = arith.subf %3, %12 : vector<16x32xf32>
    %14 = arith.mulf %13, %13 : vector<16x32xf32>
    %cst_9 = arith.constant dense<0.000000e+00> : vector<16xf32>
    %15 = vector.multi_reduction <add>, %14, %cst_9 [1] : vector<16x32xf32> to vector<16xf32>
    %16 = vector.shape_cast %15 : vector<16xf32> to vector<16x1xf32>
    %cst_10 = arith.constant 3.200000e+01 : f32
    %17 = vector.broadcast %cst_10 : f32 to vector<16x1xf32>
    %18 = arith.divf %16, %17 : vector<16x1xf32>
    %19 = vector.broadcast %11 : vector<16x1xf32> to vector<16x32xf32>
    %20 = arith.subf %3, %19 : vector<16x32xf32>
    %cst_11 = arith.constant 9.99999974E-6 : f32
    %21 = vector.broadcast %cst_11 : f32 to vector<16x1xf32>
    %22 = arith.addf %18, %21 : vector<16x1xf32>
    %23 = math.rsqrt %22 : vector<16x1xf32>
    %24 = vector.broadcast %23 : vector<16x1xf32> to vector<16x32xf32>
    %25 = arith.mulf %20, %24 : vector<16x32xf32>
    %26 = vector.broadcast %5 : vector<1x32xf32> to vector<16x32xf32>
    %27 = arith.mulf %25, %26 : vector<16x32xf32>
    %28 = vector.broadcast %7 : vector<1x32xf32> to vector<16x32xf32>
    %29 = arith.addf %27, %28 : vector<16x32xf32>
    %c0_12 = arith.constant 0 : index
    %c0_13 = arith.constant 0 : index
    %c0_14 = arith.constant 0 : index
    %30 = vector.load %arg7[%c0_12, %c0_13, %c0_14] : memref<1x32x96xf32, #tpu.memory_space<vmem>>, vector<1x32x96xf32>
    %31 = vector.shape_cast %30 : vector<1x32x96xf32> to vector<32x96xf32>
    %cst_15 = arith.constant dense<0.000000e+00> : vector<16x96xf32>
    %32 = tpu.matmul %29, %31, %cst_15 {dimension_numbers = #tpu.dot_dimension_numbers<[1], [0], [0], [1], [0, 0, 1, 1], [], []>} : vector<16x32xf32>, vector<32x96xf32>, vector<16x96xf32> -> vector<16x96xf32>
    %c0_16 = arith.constant 0 : index
    %c0_17 = arith.constant 0 : index
    %c0_18 = arith.constant 0 : index
    %33 = vector.load %arg8[%c0_16, %c0_17, %c0_18] : memref<1x1x96xf32, #tpu.memory_space<vmem>>, vector<1x1x96xf32>
    %34 = vector.shape_cast %33 : vector<1x1x96xf32> to vector<1x96xf32>
    %35 = vector.broadcast %34 : vector<1x96xf32> to vector<16x96xf32>
    %36 = arith.addf %32, %35 : vector<16x96xf32>
    %37 = vector.extract_strided_slice %36 {offsets = [0, 0], sizes = [16, 32], strides = [1, 1]} : vector<16x96xf32> to vector<16x32xf32>
    %38 = vector.extract_strided_slice %36 {offsets = [0, 32], sizes = [16, 32], strides = [1, 1]} : vector<16x96xf32> to vector<16x32xf32>
    %39 = vector.extract_strided_slice %36 {offsets = [0, 64], sizes = [16, 32], strides = [1, 1]} : vector<16x96xf32> to vector<16x32xf32>
    %c0_19 = arith.constant 0 : index
    %c0_20 = arith.constant 0 : index
    %c0_21 = arith.constant 0 : index
    %40 = vector.load %arg9[%c0_19, %c0_20, %c0_21] : memref<1x32x32xf32, #tpu.memory_space<vmem>>, vector<1x32x32xf32>
    %41 = vector.shape_cast %40 : vector<1x32x32xf32> to vector<32x32xf32>
    %c0_22 = arith.constant 0 : index
    %c0_23 = arith.constant 0 : index
    %42 = vector.load %arg4[%c0_22, %c0_23] : memref<16x16xf32, #tpu.memory_space<vmem>>, vector<16x16xf32>
    %cst_24 = arith.constant 0.000000e+00 : f32
    %43 = vector.broadcast %cst_24 : f32 to vector<16x32xf32>
    %44 = vector.extract_strided_slice %37 {offsets = [0, 0], sizes = [16, 8], strides = [1, 1]} : vector<16x32xf32> to vector<16x8xf32>
    %45 = vector.extract_strided_slice %38 {offsets = [0, 0], sizes = [16, 8], strides = [1, 1]} : vector<16x32xf32> to vector<16x8xf32>
    %46 = vector.extract_strided_slice %39 {offsets = [0, 0], sizes = [16, 8], strides = [1, 1]} : vector<16x32xf32> to vector<16x8xf32>
    %cst_25 = arith.constant dense<0.000000e+00> : vector<16x16xf32>
    %47 = tpu.matmul %44, %45, %cst_25 {dimension_numbers = #tpu.dot_dimension_numbers<[1], [1], [0], [0], [0, 0, 1, 0], [], []>} : vector<16x8xf32>, vector<16x8xf32>, vector<16x16xf32> -> vector<16x16xf32>
    %cst_26 = arith.constant 0.353553385 : f32
    %48 = vector.broadcast %cst_26 : f32 to vector<16x16xf32>
    %49 = arith.mulf %47, %48 : vector<16x16xf32>
    %50 = arith.addf %49, %42 : vector<16x16xf32>
    %cst_27 = arith.constant dense<0xFF800000> : vector<16xf32>
    %51 = vector.multi_reduction <maximumf>, %50, %cst_27 [1] : vector<16x16xf32> to vector<16xf32>
    %52 = vector.shape_cast %51 : vector<16xf32> to vector<16x1xf32>
    %53 = vector.broadcast %52 : vector<16x1xf32> to vector<16x16xf32>
    %54 = arith.subf %50, %53 : vector<16x16xf32>
    %55 = math.exp %54 : vector<16x16xf32>
    %cst_28 = arith.constant dense<0.000000e+00> : vector<16xf32>
    %56 = vector.multi_reduction <add>, %55, %cst_28 [1] : vector<16x16xf32> to vector<16xf32>
    %57 = vector.shape_cast %56 : vector<16xf32> to vector<16x1xf32>
    %58 = tpu.reciprocal %57 {approx = true} : vector<16x1xf32> -> vector<16x1xf32>
    %59 = vector.broadcast %58 : vector<16x1xf32> to vector<16x16xf32>
    %60 = arith.mulf %55, %59 : vector<16x16xf32>
    %cst_29 = arith.constant dense<0.000000e+00> : vector<16x8xf32>
    %61 = tpu.matmul %60, %46, %cst_29 {dimension_numbers = #tpu.dot_dimension_numbers<[1], [0], [0], [1], [0, 0, 1, 1], [], []>} : vector<16x16xf32>, vector<16x8xf32>, vector<16x8xf32> -> vector<16x8xf32>
    %62 = vector.extract_strided_slice %41 {offsets = [0, 0], sizes = [8, 32], strides = [1, 1]} : vector<32x32xf32> to vector<8x32xf32>
    %cst_30 = arith.constant dense<0.000000e+00> : vector<16x32xf32>
    %63 = tpu.matmul %61, %62, %cst_30 {dimension_numbers = #tpu.dot_dimension_numbers<[1], [0], [0], [1], [0, 0, 1, 1], [], []>} : vector<16x8xf32>, vector<8x32xf32>, vector<16x32xf32> -> vector<16x32xf32>
    %64 = arith.addf %43, %63 : vector<16x32xf32>
    %65 = vector.extract_strided_slice %37 {offsets = [0, 8], sizes = [16, 8], strides = [1, 1]} : vector<16x32xf32> to vector<16x8xf32>
    %66 = vector.extract_strided_slice %38 {offsets = [0, 8], sizes = [16, 8], strides = [1, 1]} : vector<16x32xf32> to vector<16x8xf32>
    %67 = vector.extract_strided_slice %39 {offsets = [0, 8], sizes = [16, 8], strides = [1, 1]} : vector<16x32xf32> to vector<16x8xf32>
    %cst_31 = arith.constant dense<0.000000e+00> : vector<16x16xf32>
    %68 = tpu.matmul %65, %66, %cst_31 {dimension_numbers = #tpu.dot_dimension_numbers<[1], [1], [0], [0], [0, 0, 1, 0], [], []>} : vector<16x8xf32>, vector<16x8xf32>, vector<16x16xf32> -> vector<16x16xf32>
    %cst_32 = arith.constant 0.353553385 : f32
    %69 = vector.broadcast %cst_32 : f32 to vector<16x16xf32>
    %70 = arith.mulf %68, %69 : vector<16x16xf32>
    %71 = arith.addf %70, %42 : vector<16x16xf32>
    %cst_33 = arith.constant dense<0xFF800000> : vector<16xf32>
    %72 = vector.multi_reduction <maximumf>, %71, %cst_33 [1] : vector<16x16xf32> to vector<16xf32>
    %73 = vector.shape_cast %72 : vector<16xf32> to vector<16x1xf32>
    %74 = vector.broadcast %73 : vector<16x1xf32> to vector<16x16xf32>
    %75 = arith.subf %71, %74 : vector<16x16xf32>
    %76 = math.exp %75 : vector<16x16xf32>
    %cst_34 = arith.constant dense<0.000000e+00> : vector<16xf32>
    %77 = vector.multi_reduction <add>, %76, %cst_34 [1] : vector<16x16xf32> to vector<16xf32>
    %78 = vector.shape_cast %77 : vector<16xf32> to vector<16x1xf32>
    %79 = tpu.reciprocal %78 {approx = true} : vector<16x1xf32> -> vector<16x1xf32>
    %80 = vector.broadcast %79 : vector<16x1xf32> to vector<16x16xf32>
    %81 = arith.mulf %76, %80 : vector<16x16xf32>
    %cst_35 = arith.constant dense<0.000000e+00> : vector<16x8xf32>
    %82 = tpu.matmul %81, %67, %cst_35 {dimension_numbers = #tpu.dot_dimension_numbers<[1], [0], [0], [1], [0, 0, 1, 1], [], []>} : vector<16x16xf32>, vector<16x8xf32>, vector<16x8xf32> -> vector<16x8xf32>
    %83 = vector.extract_strided_slice %41 {offsets = [8, 0], sizes = [8, 32], strides = [1, 1]} : vector<32x32xf32> to vector<8x32xf32>
    %cst_36 = arith.constant dense<0.000000e+00> : vector<16x32xf32>
    %84 = tpu.matmul %82, %83, %cst_36 {dimension_numbers = #tpu.dot_dimension_numbers<[1], [0], [0], [1], [0, 0, 1, 1], [], []>} : vector<16x8xf32>, vector<8x32xf32>, vector<16x32xf32> -> vector<16x32xf32>
    %85 = arith.addf %64, %84 : vector<16x32xf32>
    %86 = vector.extract_strided_slice %37 {offsets = [0, 16], sizes = [16, 8], strides = [1, 1]} : vector<16x32xf32> to vector<16x8xf32>
    %87 = vector.extract_strided_slice %38 {offsets = [0, 16], sizes = [16, 8], strides = [1, 1]} : vector<16x32xf32> to vector<16x8xf32>
    %88 = vector.extract_strided_slice %39 {offsets = [0, 16], sizes = [16, 8], strides = [1, 1]} : vector<16x32xf32> to vector<16x8xf32>
    %cst_37 = arith.constant dense<0.000000e+00> : vector<16x16xf32>
    %89 = tpu.matmul %86, %87, %cst_37 {dimension_numbers = #tpu.dot_dimension_numbers<[1], [1], [0], [0], [0, 0, 1, 0], [], []>} : vector<16x8xf32>, vector<16x8xf32>, vector<16x16xf32> -> vector<16x16xf32>
    %cst_38 = arith.constant 0.353553385 : f32
    %90 = vector.broadcast %cst_38 : f32 to vector<16x16xf32>
    %91 = arith.mulf %89, %90 : vector<16x16xf32>
    %92 = arith.addf %91, %42 : vector<16x16xf32>
    %cst_39 = arith.constant dense<0xFF800000> : vector<16xf32>
    %93 = vector.multi_reduction <maximumf>, %92, %cst_39 [1] : vector<16x16xf32> to vector<16xf32>
    %94 = vector.shape_cast %93 : vector<16xf32> to vector<16x1xf32>
    %95 = vector.broadcast %94 : vector<16x1xf32> to vector<16x16xf32>
    %96 = arith.subf %92, %95 : vector<16x16xf32>
    %97 = math.exp %96 : vector<16x16xf32>
    %cst_40 = arith.constant dense<0.000000e+00> : vector<16xf32>
    %98 = vector.multi_reduction <add>, %97, %cst_40 [1] : vector<16x16xf32> to vector<16xf32>
    %99 = vector.shape_cast %98 : vector<16xf32> to vector<16x1xf32>
    %100 = tpu.reciprocal %99 {approx = true} : vector<16x1xf32> -> vector<16x1xf32>
    %101 = vector.broadcast %100 : vector<16x1xf32> to vector<16x16xf32>
    %102 = arith.mulf %97, %101 : vector<16x16xf32>
    %cst_41 = arith.constant dense<0.000000e+00> : vector<16x8xf32>
    %103 = tpu.matmul %102, %88, %cst_41 {dimension_numbers = #tpu.dot_dimension_numbers<[1], [0], [0], [1], [0, 0, 1, 1], [], []>} : vector<16x16xf32>, vector<16x8xf32>, vector<16x8xf32> -> vector<16x8xf32>
    %104 = vector.extract_strided_slice %41 {offsets = [16, 0], sizes = [8, 32], strides = [1, 1]} : vector<32x32xf32> to vector<8x32xf32>
    %cst_42 = arith.constant dense<0.000000e+00> : vector<16x32xf32>
    %105 = tpu.matmul %103, %104, %cst_42 {dimension_numbers = #tpu.dot_dimension_numbers<[1], [0], [0], [1], [0, 0, 1, 1], [], []>} : vector<16x8xf32>, vector<8x32xf32>, vector<16x32xf32> -> vector<16x32xf32>
    %106 = arith.addf %85, %105 : vector<16x32xf32>
    %107 = vector.extract_strided_slice %37 {offsets = [0, 24], sizes = [16, 8], strides = [1, 1]} : vector<16x32xf32> to vector<16x8xf32>
    %108 = vector.extract_strided_slice %38 {offsets = [0, 24], sizes = [16, 8], strides = [1, 1]} : vector<16x32xf32> to vector<16x8xf32>
    %109 = vector.extract_strided_slice %39 {offsets = [0, 24], sizes = [16, 8], strides = [1, 1]} : vector<16x32xf32> to vector<16x8xf32>
    %cst_43 = arith.constant dense<0.000000e+00> : vector<16x16xf32>
    %110 = tpu.matmul %107, %108, %cst_43 {dimension_numbers = #tpu.dot_dimension_numbers<[1], [1], [0], [0], [0, 0, 1, 0], [], []>} : vector<16x8xf32>, vector<16x8xf32>, vector<16x16xf32> -> vector<16x16xf32>
    %cst_44 = arith.constant 0.353553385 : f32
    %111 = vector.broadcast %cst_44 : f32 to vector<16x16xf32>
    %112 = arith.mulf %110, %111 : vector<16x16xf32>
    %113 = arith.addf %112, %42 : vector<16x16xf32>
    %cst_45 = arith.constant dense<0xFF800000> : vector<16xf32>
    %114 = vector.multi_reduction <maximumf>, %113, %cst_45 [1] : vector<16x16xf32> to vector<16xf32>
    %115 = vector.shape_cast %114 : vector<16xf32> to vector<16x1xf32>
    %116 = vector.broadcast %115 : vector<16x1xf32> to vector<16x16xf32>
    %117 = arith.subf %113, %116 : vector<16x16xf32>
    %118 = math.exp %117 : vector<16x16xf32>
    %cst_46 = arith.constant dense<0.000000e+00> : vector<16xf32>
    %119 = vector.multi_reduction <add>, %118, %cst_46 [1] : vector<16x16xf32> to vector<16xf32>
    %120 = vector.shape_cast %119 : vector<16xf32> to vector<16x1xf32>
    %121 = tpu.reciprocal %120 {approx = true} : vector<16x1xf32> -> vector<16x1xf32>
    %122 = vector.broadcast %121 : vector<16x1xf32> to vector<16x16xf32>
    %123 = arith.mulf %118, %122 : vector<16x16xf32>
    %cst_47 = arith.constant dense<0.000000e+00> : vector<16x8xf32>
    %124 = tpu.matmul %123, %109, %cst_47 {dimension_numbers = #tpu.dot_dimension_numbers<[1], [0], [0], [1], [0, 0, 1, 1], [], []>} : vector<16x16xf32>, vector<16x8xf32>, vector<16x8xf32> -> vector<16x8xf32>
    %125 = vector.extract_strided_slice %41 {offsets = [24, 0], sizes = [8, 32], strides = [1, 1]} : vector<32x32xf32> to vector<8x32xf32>
    %cst_48 = arith.constant dense<0.000000e+00> : vector<16x32xf32>
    %126 = tpu.matmul %124, %125, %cst_48 {dimension_numbers = #tpu.dot_dimension_numbers<[1], [0], [0], [1], [0, 0, 1, 1], [], []>} : vector<16x8xf32>, vector<8x32xf32>, vector<16x32xf32> -> vector<16x32xf32>
    %127 = arith.addf %106, %126 : vector<16x32xf32>
    %128 = arith.addf %3, %127 : vector<16x32xf32>
    %c0_49 = arith.constant 0 : index
    %c0_50 = arith.constant 0 : index
    %c0_51 = arith.constant 0 : index
    %129 = vector.load %arg10[%c0_49, %c0_50, %c0_51] : memref<1x1x32xf32, #tpu.memory_space<vmem>>, vector<1x1x32xf32>
    %130 = vector.shape_cast %129 : vector<1x1x32xf32> to vector<1x32xf32>
    %131 = vector.broadcast %130 : vector<1x32xf32> to vector<16x32xf32>
    %132 = arith.addf %128, %131 : vector<16x32xf32>
    %c0_52 = arith.constant 0 : index
    %c0_53 = arith.constant 0 : index
    %c0_54 = arith.constant 0 : index
    %133 = vector.load %arg11[%c0_52, %c0_53, %c0_54] : memref<1x1x32xf32, #tpu.memory_space<vmem>>, vector<1x1x32xf32>
    %134 = vector.shape_cast %133 : vector<1x1x32xf32> to vector<1x32xf32>
    %c0_55 = arith.constant 0 : index
    %c0_56 = arith.constant 0 : index
    %c0_57 = arith.constant 0 : index
    %135 = vector.load %arg12[%c0_55, %c0_56, %c0_57] : memref<1x1x32xf32, #tpu.memory_space<vmem>>, vector<1x1x32xf32>
    %136 = vector.shape_cast %135 : vector<1x1x32xf32> to vector<1x32xf32>
    %cst_58 = arith.constant dense<0.000000e+00> : vector<16xf32>
    %137 = vector.multi_reduction <add>, %132, %cst_58 [1] : vector<16x32xf32> to vector<16xf32>
    %138 = vector.shape_cast %137 : vector<16xf32> to vector<16x1xf32>
    %cst_59 = arith.constant 3.200000e+01 : f32
    %139 = vector.broadcast %cst_59 : f32 to vector<16x1xf32>
    %140 = arith.divf %138, %139 : vector<16x1xf32>
    %141 = vector.broadcast %140 : vector<16x1xf32> to vector<16x32xf32>
    %142 = arith.subf %132, %141 : vector<16x32xf32>
    %143 = arith.mulf %142, %142 : vector<16x32xf32>
    %cst_60 = arith.constant dense<0.000000e+00> : vector<16xf32>
    %144 = vector.multi_reduction <add>, %143, %cst_60 [1] : vector<16x32xf32> to vector<16xf32>
    %145 = vector.shape_cast %144 : vector<16xf32> to vector<16x1xf32>
    %cst_61 = arith.constant 3.200000e+01 : f32
    %146 = vector.broadcast %cst_61 : f32 to vector<16x1xf32>
    %147 = arith.divf %145, %146 : vector<16x1xf32>
    %148 = vector.broadcast %140 : vector<16x1xf32> to vector<16x32xf32>
    %149 = arith.subf %132, %148 : vector<16x32xf32>
    %cst_62 = arith.constant 9.99999974E-6 : f32
    %150 = vector.broadcast %cst_62 : f32 to vector<16x1xf32>
    %151 = arith.addf %147, %150 : vector<16x1xf32>
    %152 = math.rsqrt %151 : vector<16x1xf32>
    %153 = vector.broadcast %152 : vector<16x1xf32> to vector<16x32xf32>
    %154 = arith.mulf %149, %153 : vector<16x32xf32>
    %155 = vector.broadcast %134 : vector<1x32xf32> to vector<16x32xf32>
    %156 = arith.mulf %154, %155 : vector<16x32xf32>
    %157 = vector.broadcast %136 : vector<1x32xf32> to vector<16x32xf32>
    %158 = arith.addf %156, %157 : vector<16x32xf32>
    %c0_63 = arith.constant 0 : index
    %c0_64 = arith.constant 0 : index
    %c0_65 = arith.constant 0 : index
    %159 = vector.load %arg13[%c0_63, %c0_64, %c0_65] : memref<1x32x128xf32, #tpu.memory_space<vmem>>, vector<1x32x128xf32>
    %160 = vector.shape_cast %159 : vector<1x32x128xf32> to vector<32x128xf32>
    %cst_66 = arith.constant dense<0.000000e+00> : vector<16x128xf32>
    %161 = tpu.matmul %158, %160, %cst_66 {dimension_numbers = #tpu.dot_dimension_numbers<[1], [0], [0], [1], [0, 0, 1, 1], [], []>} : vector<16x32xf32>, vector<32x128xf32>, vector<16x128xf32> -> vector<16x128xf32>
    %c0_67 = arith.constant 0 : index
    %c0_68 = arith.constant 0 : index
    %c0_69 = arith.constant 0 : index
    %162 = vector.load %arg14[%c0_67, %c0_68, %c0_69] : memref<1x1x128xf32, #tpu.memory_space<vmem>>, vector<1x1x128xf32>
    %163 = vector.shape_cast %162 : vector<1x1x128xf32> to vector<1x128xf32>
    %164 = vector.broadcast %163 : vector<1x128xf32> to vector<16x128xf32>
    %165 = arith.addf %161, %164 : vector<16x128xf32>
    %cst_70 = arith.constant 1.702000e+00 : f32
    %166 = vector.broadcast %cst_70 : f32 to vector<16x128xf32>
    %167 = arith.mulf %166, %165 : vector<16x128xf32>
    %168 = arith.negf %167 : vector<16x128xf32>
    %169 = math.exp %168 : vector<16x128xf32>
    %cst_71 = arith.constant 1.000000e+00 : f32
    %170 = vector.broadcast %cst_71 : f32 to vector<16x128xf32>
    %171 = arith.addf %170, %169 : vector<16x128xf32>
    %172 = arith.divf %170, %171 : vector<16x128xf32>
    %173 = arith.mulf %165, %172 : vector<16x128xf32>
    %c0_72 = arith.constant 0 : index
    %c0_73 = arith.constant 0 : index
    %c0_74 = arith.constant 0 : index
    %174 = vector.load %arg15[%c0_72, %c0_73, %c0_74] : memref<1x128x32xf32, #tpu.memory_space<vmem>>, vector<1x128x32xf32>
    %175 = vector.shape_cast %174 : vector<1x128x32xf32> to vector<128x32xf32>
    %cst_75 = arith.constant dense<0.000000e+00> : vector<16x32xf32>
    %176 = tpu.matmul %173, %175, %cst_75 {dimension_numbers = #tpu.dot_dimension_numbers<[1], [0], [0], [1], [0, 0, 1, 1], [], []>} : vector<16x128xf32>, vector<128x32xf32>, vector<16x32xf32> -> vector<16x32xf32>
    %c0_76 = arith.constant 0 : index
    %c0_77 = arith.constant 0 : index
    %c0_78 = arith.constant 0 : index
    %177 = vector.load %arg16[%c0_76, %c0_77, %c0_78] : memref<1x1x32xf32, #tpu.memory_space<vmem>>, vector<1x1x32xf32>
    %178 = vector.shape_cast %177 : vector<1x1x32xf32> to vector<1x32xf32>
    %179 = vector.broadcast %178 : vector<1x32xf32> to vector<16x32xf32>
    %180 = arith.addf %176, %179 : vector<16x32xf32>
    %181 = arith.addf %132, %180 : vector<16x32xf32>
    %c0_79 = arith.constant 0 : index
    %c0_80 = arith.constant 0 : index
    %182 = vector.load %arg21[%c0_79, %c0_80] : memref<16x32xf32, #tpu.memory_space<vmem>>, vector<16x32xf32>
    tpu.vector_store %arg21[%c0_79, %c0_80], %181 {strides = array<i32>} : memref<16x32xf32, #tpu.memory_space<vmem>>, vector<16x32xf32>,
    %c1_i32 = arith.constant 1 : i32
    %183 = arith.cmpi eq, %arg0, %c1_i32 : i32
    %184 = arith.extui %183 : i1 to i32
    %c0_i32_81 = arith.constant 0 : i32
    %185 = arith.cmpi ne, %184, %c0_i32_81 : i32
    scf.if %185 {
      %c0_82 = arith.constant 0 : index
      %186 = memref.load %arg1[%c0_82] : memref<2xi32, #tpu.memory_space<smem>>
      %c0_i32_83 = arith.constant 0 : i32
      %187 = arith.addi %c0_i32_83, %186 : i32
      %188 = arith.index_cast %187 : i32 to index
      %c0_84 = arith.constant 0 : index
      %189 = vector.load %arg21[%188, %c0_84] : memref<16x32xf32, #tpu.memory_space<vmem>>, vector<1x32xf32>
      %c1 = arith.constant 1 : index
      %190 = memref.load %arg1[%c1] : memref<2xi32, #tpu.memory_space<smem>>
      %c8_i32 = arith.constant 8 : i32
      %191 = arith.addi %c8_i32, %190 : i32
      %192 = arith.index_cast %191 : i32 to index
      %c0_85 = arith.constant 0 : index
      %193 = vector.load %arg21[%192, %c0_85] : memref<16x32xf32, #tpu.memory_space<vmem>>, vector<1x32xf32>
      %194 = tpu.concatenate %189, %193 in 0 : vector<1x32xf32>, vector<1x32xf32> -> vector<2x32xf32>
      %c0_86 = arith.constant 0 : index
      %c0_87 = arith.constant 0 : index
      %195 = vector.load %arg17[%c0_86, %c0_87] : memref<1x32xf32, #tpu.memory_space<vmem>>, vector<1x32xf32>
      %c0_88 = arith.constant 0 : index
      %c0_89 = arith.constant 0 : index
      %196 = vector.load %arg18[%c0_88, %c0_89] : memref<1x32xf32, #tpu.memory_space<vmem>>, vector<1x32xf32>
      %cst_90 = arith.constant dense<0.000000e+00> : vector<2xf32>
      %197 = vector.multi_reduction <add>, %194, %cst_90 [1] : vector<2x32xf32> to vector<2xf32>
      %198 = vector.shape_cast %197 : vector<2xf32> to vector<2x1xf32>
      %cst_91 = arith.constant 3.200000e+01 : f32
      %199 = vector.broadcast %cst_91 : f32 to vector<2x1xf32>
      %200 = arith.divf %198, %199 : vector<2x1xf32>
      %201 = vector.broadcast %200 : vector<2x1xf32> to vector<2x32xf32>
      %202 = arith.subf %194, %201 : vector<2x32xf32>
      %203 = arith.mulf %202, %202 : vector<2x32xf32>
      %cst_92 = arith.constant dense<0.000000e+00> : vector<2xf32>
      %204 = vector.multi_reduction <add>, %203, %cst_92 [1] : vector<2x32xf32> to vector<2xf32>
      %205 = vector.shape_cast %204 : vector<2xf32> to vector<2x1xf32>
      %cst_93 = arith.constant 3.200000e+01 : f32
      %206 = vector.broadcast %cst_93 : f32 to vector<2x1xf32>
      %207 = arith.divf %205, %206 : vector<2x1xf32>
      %208 = vector.broadcast %200 : vector<2x1xf32> to vector<2x32xf32>
      %209 = arith.subf %194, %208 : vector<2x32xf32>
      %cst_94 = arith.constant 9.99999974E-6 : f32
      %210 = vector.broadcast %cst_94 : f32 to vector<2x1xf32>
      %211 = arith.addf %207, %210 : vector<2x1xf32>
      %212 = math.rsqrt %211 : vector<2x1xf32>
      %213 = vector.broadcast %212 : vector<2x1xf32> to vector<2x32xf32>
      %214 = arith.mulf %209, %213 : vector<2x32xf32>
      %215 = vector.broadcast %195 : vector<1x32xf32> to vector<2x32xf32>
      %216 = arith.mulf %214, %215 : vector<2x32xf32>
      %217 = vector.broadcast %196 : vector<1x32xf32> to vector<2x32xf32>
      %218 = arith.addf %216, %217 : vector<2x32xf32>
      %c0_95 = arith.constant 0 : index
      %c0_96 = arith.constant 0 : index
      %219 = vector.load %arg19[%c0_95, %c0_96] : memref<32x32xf32, #tpu.memory_space<vmem>>, vector<32x32xf32>
      %cst_97 = arith.constant dense<0.000000e+00> : vector<2x32xf32>
      %220 = tpu.matmul %218, %219, %cst_97 {dimension_numbers = #tpu.dot_dimension_numbers<[1], [0], [0], [1], [0, 0, 1, 1], [], []>} : vector<2x32xf32>, vector<32x32xf32>, vector<2x32xf32> -> vector<2x32xf32>
      %c0_98 = arith.constant 0 : index
      %c0_99 = arith.constant 0 : index
      %221 = vector.load %arg20[%c0_98, %c0_99] : memref<2x32xf32, #tpu.memory_space<vmem>>, vector<2x32xf32>
      tpu.vector_store %arg20[%c0_98, %c0_99], %220 {strides = array<i32>} : memref<2x32xf32, #tpu.memory_space<vmem>>, vector<2x32xf32>,
    } else {
    }
    return
  }
  func.func @transform_0(%arg0: i32, %arg1: memref<2xi32, #tpu.memory_space<smem>>) -> (i32, i32) {
    %c0_i32 = arith.constant 0 : i32
    %c0_i32_0 = arith.constant 0 : i32
    %c0_i32_1 = arith.constant 0 : i32
    return %c0_i32, %c0_i32_0 : i32, i32
  }
  func.func @transform_1(%arg0: i32, %arg1: memref<2xi32, #tpu.memory_space<smem>>) -> (i32, i32) {
    %c0_i32 = arith.constant 0 : i32
    %c0_i32_0 = arith.constant 0 : i32
    %c0_i32_1 = arith.constant 0 : i32
    return %c0_i32, %c0_i32_0 : i32, i32
  }
  func.func @transform_2(%arg0: i32, %arg1: memref<2xi32, #tpu.memory_space<smem>>) -> (i32, i32) {
    %c0_i32 = arith.constant 0 : i32
    %c0_i32_0 = arith.constant 0 : i32
    %c0_i32_1 = arith.constant 0 : i32
    return %c0_i32, %c0_i32_0 : i32, i32
  }
  func.func @transform_3(%arg0: i32, %arg1: memref<2xi32, #tpu.memory_space<smem>>) -> (i32, i32, i32) {
    %c0_i32 = arith.constant 0 : i32
    %c0_i32_0 = arith.constant 0 : i32
    %c0_i32_1 = arith.constant 0 : i32
    return %arg0, %c0_i32, %c0_i32_0 : i32, i32, i32
  }
  func.func @transform_4(%arg0: i32, %arg1: memref<2xi32, #tpu.memory_space<smem>>) -> (i32, i32, i32) {
    %c0_i32 = arith.constant 0 : i32
    %c0_i32_0 = arith.constant 0 : i32
    %c0_i32_1 = arith.constant 0 : i32
    return %arg0, %c0_i32, %c0_i32_0 : i32, i32, i32
  }
  func.func @transform_5(%arg0: i32, %arg1: memref<2xi32, #tpu.memory_space<smem>>) -> (i32, i32, i32) {
    %c0_i32 = arith.constant 0 : i32
    %c0_i32_0 = arith.constant 0 : i32
    %c0_i32_1 = arith.constant 0 : i32
    return %arg0, %c0_i32, %c0_i32_0 : i32, i32, i32
  }
  func.func @transform_6(%arg0: i32, %arg1: memref<2xi32, #tpu.memory_space<smem>>) -> (i32, i32, i32) {
    %c0_i32 = arith.constant 0 : i32
    %c0_i32_0 = arith.constant 0 : i32
    %c0_i32_1 = arith.constant 0 : i32
    return %arg0, %c0_i32, %c0_i32_0 : i32, i32, i32
  }
  func.func @transform_7(%arg0: i32, %arg1: memref<2xi32, #tpu.memory_space<smem>>) -> (i32, i32, i32) {
    %c0_i32 = arith.constant 0 : i32
    %c0_i32_0 = arith.constant 0 : i32
    %c0_i32_1 = arith.constant 0 : i32
    return %arg0, %c0_i32, %c0_i32_0 : i32, i32, i32
  }
  func.func @transform_8(%arg0: i32, %arg1: memref<2xi32, #tpu.memory_space<smem>>) -> (i32, i32, i32) {
    %c0_i32 = arith.constant 0 : i32
    %c0_i32_0 = arith.constant 0 : i32
    %c0_i32_1 = arith.constant 0 : i32
    return %arg0, %c0_i32, %c0_i32_0 : i32, i32, i32
  }
  func.func @transform_9(%arg0: i32, %arg1: memref<2xi32, #tpu.memory_space<smem>>) -> (i32, i32, i32) {
    %c0_i32 = arith.constant 0 : i32
    %c0_i32_0 = arith.constant 0 : i32
    %c0_i32_1 = arith.constant 0 : i32
    return %arg0, %c0_i32, %c0_i32_0 : i32, i32, i32
  }
  func.func @transform_10(%arg0: i32, %arg1: memref<2xi32, #tpu.memory_space<smem>>) -> (i32, i32, i32) {
    %c0_i32 = arith.constant 0 : i32
    %c0_i32_0 = arith.constant 0 : i32
    %c0_i32_1 = arith.constant 0 : i32
    return %arg0, %c0_i32, %c0_i32_0 : i32, i32, i32
  }
  func.func @transform_11(%arg0: i32, %arg1: memref<2xi32, #tpu.memory_space<smem>>) -> (i32, i32, i32) {
    %c0_i32 = arith.constant 0 : i32
    %c0_i32_0 = arith.constant 0 : i32
    %c0_i32_1 = arith.constant 0 : i32
    return %arg0, %c0_i32, %c0_i32_0 : i32, i32, i32
  }
  func.func @transform_12(%arg0: i32, %arg1: memref<2xi32, #tpu.memory_space<smem>>) -> (i32, i32, i32) {
    %c0_i32 = arith.constant 0 : i32
    %c0_i32_0 = arith.constant 0 : i32
    %c0_i32_1 = arith.constant 0 : i32
    return %arg0, %c0_i32, %c0_i32_0 : i32, i32, i32
  }
  func.func @transform_13(%arg0: i32, %arg1: memref<2xi32, #tpu.memory_space<smem>>) -> (i32, i32, i32) {
    %c0_i32 = arith.constant 0 : i32
    %c0_i32_0 = arith.constant 0 : i32
    %c0_i32_1 = arith.constant 0 : i32
    return %arg0, %c0_i32, %c0_i32_0 : i32, i32, i32
  }
  func.func @transform_14(%arg0: i32, %arg1: memref<2xi32, #tpu.memory_space<smem>>) -> (i32, i32, i32) {
    %c0_i32 = arith.constant 0 : i32
    %c0_i32_0 = arith.constant 0 : i32
    %c0_i32_1 = arith.constant 0 : i32
    return %arg0, %c0_i32, %c0_i32_0 : i32, i32, i32
  }
  func.func @transform_15(%arg0: i32, %arg1: memref<2xi32, #tpu.memory_space<smem>>) -> (i32, i32) {
    %c0_i32 = arith.constant 0 : i32
    %c0_i32_0 = arith.constant 0 : i32
    %c0_i32_1 = arith.constant 0 : i32
    return %c0_i32, %c0_i32_0 : i32, i32
  }
  func.func @transform_16(%arg0: i32, %arg1: memref<2xi32, #tpu.memory_space<smem>>) -> (i32, i32) {
    %c0_i32 = arith.constant 0 : i32
    %c0_i32_0 = arith.constant 0 : i32
    %c0_i32_1 = arith.constant 0 : i32
    return %c0_i32, %c0_i32_0 : i32, i32
  }
  func.func @transform_17(%arg0: i32, %arg1: memref<2xi32, #tpu.memory_space<smem>>) -> (i32, i32) {
    %c0_i32 = arith.constant 0 : i32
    %c0_i32_0 = arith.constant 0 : i32
    %c0_i32_1 = arith.constant 0 : i32
    return %c0_i32, %c0_i32_0 : i32, i32
  }
  func.func @transform_18(%arg0: i32, %arg1: memref<2xi32, #tpu.memory_space<smem>>) -> (i32, i32) {
    %c0_i32 = arith.constant 0 : i32
    %c0_i32_0 = arith.constant 0 : i32
    %c0_i32_1 = arith.constant 0 : i32
    return %c0_i32, %c0_i32_0 : i32, i32
  }
}

</mosaic_0001>

<llo_original>
// kernel: tpu_custom_call.1
$region0: #{tpu_custom_call.1}
  #allocation0 [shape = 'u32[]', space=smem, size = 0x4, offset = 0x4, fixed_abs, tag = 'smem constant byte address 0x4 - core index']
  #allocation1 [shape = 'u32[144,128]{1,0:T(1,128)}', space=vmem, size = 0x12000, scoped, tag = 'internal scratch']
  #allocation2 [shape = 'f32[16,32]{1,0:T(8,128)}', space=vmem, size = 0x2000, scoped, tag = 'scratch operand']
  #allocation3 [shape = 's32[1]{0}', space=sflag, size = 0x4, scoped, tag = 'scoped memory for tpu_custom_call.1']
  #allocation4 [shape = 'u8[512]{0}', space=smem, size = 0x200, scoped, tag = 'prefetched SMEM operand 0']
  %s0 = inlined_call_operand.vmem [shape: s32[2], index: 0, kind: input, shape index: {}]
  %s1 = inlined_call_operand.vmem [shape: f32[16,32], index: 1, kind: input, shape index: {}]
  %s2 = inlined_call_operand.vmem [shape: f32[16,32], index: 2, kind: input, shape index: {}]
  %s3 = inlined_call_operand.vmem [shape: f32[16,16], index: 3, kind: input, shape index: {}]
  %s4 = inlined_call_operand.vmem [shape: f32[2,1,32], index: 4, kind: input, shape index: {}]
  %s5 = inlined_call_operand.vmem [shape: f32[2,1,32], index: 5, kind: input, shape index: {}]
  %s6 = inlined_call_operand.vmem [shape: f32[2,32,96], index: 6, kind: input, shape index: {}]
  %s7 = inlined_call_operand.vmem [shape: f32[2,1,96], index: 7, kind: input, shape index: {}]
  %s8 = inlined_call_operand.vmem [shape: f32[2,32,32], index: 8, kind: input, shape index: {}]
  %s9 = inlined_call_operand.vmem [shape: f32[2,1,32], index: 9, kind: input, shape index: {}]
  %s10 = inlined_call_operand.vmem [shape: f32[2,1,32], index: 10, kind: input, shape index: {}]
  %s11 = inlined_call_operand.vmem [shape: f32[2,1,32], index: 11, kind: input, shape index: {}]
  %s12 = inlined_call_operand.vmem [shape: f32[2,32,128], index: 12, kind: input, shape index: {}]
  %s13 = inlined_call_operand.vmem [shape: f32[2,1,128], index: 13, kind: input, shape index: {}]
  %s14 = inlined_call_operand.vmem [shape: f32[2,128,32], index: 14, kind: input, shape index: {}]
  %s15 = inlined_call_operand.vmem [shape: f32[2,1,32], index: 15, kind: input, shape index: {}]
  %s16 = inlined_call_operand.vmem [shape: f32[1,32], index: 16, kind: input, shape index: {}]
  %s17 = inlined_call_operand.vmem [shape: f32[1,32], index: 17, kind: input, shape index: {}]
  %s18 = inlined_call_operand.vmem [shape: f32[32,32], index: 18, kind: input, shape index: {}]
  %s19 = inlined_call_operand.hbm [shape: f32[2,32], index: 19, kind: output, shape index: {}]
  %s20 = sld [smem:[#allocation0]]
  $region113: #{tpu_custom_call.1} parent=0
    _
  %s22 = ssub.s32 1, %s20
  %s23 = scalar_select 0, %s22, %s20
  %s24 = sshll.u32 %s0, 4
  %s25 = int_to_ptr.vmem [resolvable:$true] %s24
  %27 = dma.vmem_to_smem %s25, 16, [#allocation4], [#allocation3]
  %28 = dma.done [#allocation3], 16
  %29 = sfence
  $region1: #{tpu_custom_call.1} parent=0
    #allocation5 [shape = 'u8[1024]{0}', space=vmem, size = 0x400, scoped, tag = 'output window, operand 0, single buffered']
    #allocation6 [shape = 's32[2]{0}', space=sflag, size = 0x8, scoped, tag = 'scoped memory for tpu_custom_call.1']
    %30 = vsyncpa [#allocation6], 0
    loop: start=0, step=1, limit=4
    $region2: #{tpu_custom_call.1} parent=1 // loop_pre_header
      _
    $region3: #{tpu_custom_call.1} parent=1 // loop_header
      %s32 = sphi 0, %s36
      %p33 = scmp.ge.s32.totalorder %s32, 4
      %s40 = sphi 0, %s40
      %s42 = sphi 0, %s40
      %s43 = sphi 0, %s42
      %s57 = sphi 0, %s43
      %s61 = sphi 0, %s61
      %s63 = sphi 0, %s61
      %s64 = sphi 0, %s63
      %s78 = sphi 0, %s64
      %s82 = sphi 0, %s82
      %s84 = sphi 0, %s82
      %s85 = sphi 0, %s84
      %s99 = sphi 0, %s85
      %s105 = sphi 0, %s107
      %s108 = sphi 0, %s105
      %s109 = sphi 0, %s108
      %s125 = sphi 0, %s109
      %s131 = sphi 0, %s133
      %s134 = sphi 0, %s131
      %s135 = sphi 0, %s134
      %s151 = sphi 0, %s135
      %s157 = sphi 0, %s159
      %s160 = sphi 0, %s157
      %s161 = sphi 0, %s160
      %s177 = sphi 0, %s161
      %s183 = sphi 0, %s185
      %s186 = sphi 0, %s183
      %s187 = sphi 0, %s186
      %s203 = sphi 0, %s187
      %s209 = sphi 0, %s211
      %s212 = sphi 0, %s209
      %s213 = sphi 0, %s212
      %s229 = sphi 0, %s213
      %s235 = sphi 0, %s237
      %s238 = sphi 0, %s235
      %s239 = sphi 0, %s238
      %s255 = sphi 0, %s239
      %s261 = sphi 0, %s263
      %s264 = sphi 0, %s261
      %s265 = sphi 0, %s264
      %s281 = sphi 0, %s265
      %s287 = sphi 0, %s289
      %s290 = sphi 0, %s287
      %s291 = sphi 0, %s290
      %s307 = sphi 0, %s291
      %s313 = sphi 0, %s315
      %s316 = sphi 0, %s313
      %s317 = sphi 0, %s316
      %s333 = sphi 0, %s317
      %s339 = sphi 0, %s341
      %s342 = sphi 0, %s339
      %s343 = sphi 0, %s342
      %s359 = sphi 0, %s343
      %s365 = sphi 0, %s367
      %s368 = sphi 0, %s365
      %s369 = sphi 0, %s368
      %s385 = sphi 0, %s369
      %s391 = sphi 0, %s393
      %s394 = sphi 0, %s391
      %s395 = sphi 0, %s394
      %s411 = sphi 0, %s395
      %s415 = sphi 0, %s415
      %s417 = sphi 0, %s415
      %s418 = sphi 0, %s417
      %s432 = sphi 0, %s418
      %s436 = sphi 0, %s436
      %s438 = sphi 0, %s436
      %s439 = sphi 0, %s438
      %s453 = sphi 0, %s439
      %s457 = sphi 0, %s457
      %s459 = sphi 0, %s457
      %s460 = sphi 0, %s459
      %s474 = sphi 0, %s460
      %s478 = sphi 0, %s478
      %s480 = sphi 0, %s478
      %s481 = sphi 0, %s480
      %s495 = sphi 0, %s481
    $region4: #{tpu_custom_call.1} parent=1 // loop_header_branch
      %35 = sbr.rel (%p33) target = $region8
    $region5: #{tpu_custom_call.1} parent=1 // loop_body
      %s37 = ssub.s32 %s32, 1
      %s38 = ssub.s32 %s32, 2
      %s39 = sadd.s32 %s32, 1
      %s41 = sadd.s32 %s40, 1
      %p44 = scmp.eq.s32.totalorder %s32, 1
      %p45 = scmp.ne.s32.totalorder %s40, %s42
      %p46 = scmp.eq.s32.totalorder %s32, 0
      %p47 = por %p45, %p46
      %p48 = scmp.ne.s32.totalorder %s40, %s42
      %p49 = scmp.eq.s32.totalorder %s37, 1
      %p50 = por %p48, %p49
      %p51 = scmp.ne.s32.totalorder %s42, %s43
      %p52 = scmp.eq.s32.totalorder %s37, 0
      %p53 = por %p51, %p52
      %p54 = scmp.ne.s32.totalorder %s42, %s43
      %p55 = scmp.eq.s32.totalorder %s38, 1
      %p56 = por %p54, %p55
      %p58 = scmp.ne.s32.totalorder %s43, %s57
      %p59 = scmp.eq.s32.totalorder %s38, 0
      %p60 = por %p58, %p59
      %s62 = sadd.s32 %s61, 1
      %p65 = scmp.eq.s32.totalorder %s32, 1
      %p66 = scmp.ne.s32.totalorder %s61, %s63
      %p67 = scmp.eq.s32.totalorder %s32, 0
      %p68 = por %p66, %p67
      %p69 = scmp.ne.s32.totalorder %s61, %s63
      %p70 = scmp.eq.s32.totalorder %s37, 1
      %p71 = por %p69, %p70
      %p72 = scmp.ne.s32.totalorder %s63, %s64
      %p73 = scmp.eq.s32.totalorder %s37, 0
      %p74 = por %p72, %p73
      %p75 = scmp.ne.s32.totalorder %s63, %s64
      %p76 = scmp.eq.s32.totalorder %s38, 1
      %p77 = por %p75, %p76
      %p79 = scmp.ne.s32.totalorder %s64, %s78
      %p80 = scmp.eq.s32.totalorder %s38, 0
      %p81 = por %p79, %p80
      %s83 = sadd.s32 %s82, 1
      %p86 = scmp.eq.s32.totalorder %s32, 1
      %p87 = scmp.ne.s32.totalorder %s82, %s84
      %p88 = scmp.eq.s32.totalorder %s32, 0
      %p89 = por %p87, %p88
      %p90 = scmp.ne.s32.totalorder %s82, %s84
      %p91 = scmp.eq.s32.totalorder %s37, 1
      %p92 = por %p90, %p91
      %p93 = scmp.ne.s32.totalorder %s84, %s85
      %p94 = scmp.eq.s32.totalorder %s37, 0
      %p95 = por %p93, %p94
      %p96 = scmp.ne.s32.totalorder %s84, %s85
      %p97 = scmp.eq.s32.totalorder %s38, 1
      %p98 = por %p96, %p97
      %p100 = scmp.ne.s32.totalorder %s85, %s99
      %p101 = scmp.eq.s32.totalorder %s38, 0
      %p102 = por %p100, %p101
      %s103 = ssub.s32 %s32, %s39
      %p104 = scmp.eq.s32.totalorder %s103, 0
      %s106 = sadd.s32 %s105, 1
      %s107 = scalar_select %p104, %s105, %s106
      %p110 = pneg %p104
      %p111 = scmp.eq.s32.totalorder %s32, 1
      %p112 = por %p110, %p111
      %p113 = scmp.ne.s32.totalorder %s105, %s108
      %p114 = scmp.eq.s32.totalorder %s32, 0
      %p115 = por %p113, %p114
      %p116 = scmp.ne.s32.totalorder %s105, %s108
      %p117 = scmp.eq.s32.totalorder %s37, 1
      %p118 = por %p116, %p117
      %p119 = scmp.ne.s32.totalorder %s108, %s109
      %p120 = scmp.eq.s32.totalorder %s37, 0
      %p121 = por %p119, %p120
      %p122 = scmp.ne.s32.totalorder %s108, %s109
      %p123 = scmp.eq.s32.totalorder %s38, 1
      %p124 = por %p122, %p123
      %p126 = scmp.ne.s32.totalorder %s109, %s125
      %p127 = scmp.eq.s32.totalorder %s38, 0
      %p128 = por %p126, %p127
      %s129 = ssub.s32 %s32, %s39
      %p130 = scmp.eq.s32.totalorder %s129, 0
      %s132 = sadd.s32 %s131, 1
      %s133 = scalar_select %p130, %s131, %s132
      %p136 = pneg %p130
      %p137 = scmp.eq.s32.totalorder %s32, 1
      %p138 = por %p136, %p137
      %p139 = scmp.ne.s32.totalorder %s131, %s134
      %p140 = scmp.eq.s32.totalorder %s32, 0
      %p141 = por %p139, %p140
      %p142 = scmp.ne.s32.totalorder %s131, %s134
      %p143 = scmp.eq.s32.totalorder %s37, 1
      %p144 = por %p142, %p143
      %p145 = scmp.ne.s32.totalorder %s134, %s135
      %p146 = scmp.eq.s32.totalorder %s37, 0
      %p147 = por %p145, %p146
      %p148 = scmp.ne.s32.totalorder %s134, %s135
      %p149 = scmp.eq.s32.totalorder %s38, 1
      %p150 = por %p148, %p149
      %p152 = scmp.ne.s32.totalorder %s135, %s151
      %p153 = scmp.eq.s32.totalorder %s38, 0
      %p154 = por %p152, %p153
      %s155 = ssub.s32 %s32, %s39
      %p156 = scmp.eq.s32.totalorder %s155, 0
      %s158 = sadd.s32 %s157, 1
      %s159 = scalar_select %p156, %s157, %s158
      %p162 = pneg %p156
      %p163 = scmp.eq.s32.totalorder %s32, 1
      %p164 = por %p162, %p163
      %p165 = scmp.ne.s32.totalorder %s157, %s160
      %p166 = scmp.eq.s32.totalorder %s32, 0
      %p167 = por %p165, %p166
      %p168 = scmp.ne.s32.totalorder %s157, %s160
      %p169 = scmp.eq.s32.totalorder %s37, 1
      %p170 = por %p168, %p169
      %p171 = scmp.ne.s32.totalorder %s160, %s161
      %p172 = scmp.eq.s32.totalorder %s37, 0
      %p173 = por %p171, %p172
      %p174 = scmp.ne.s32.totalorder %s160, %s161
      %p175 = scmp.eq.s32.totalorder %s38, 1
      %p176 = por %p174, %p175
      %p178 = scmp.ne.s32.totalorder %s161, %s177
      %p179 = scmp.eq.s32.totalorder %s38, 0
      %p180 = por %p178, %p179
      %s181 = ssub.s32 %s32, %s39
      %p182 = scmp.eq.s32.totalorder %s181, 0
      %s184 = sadd.s32 %s183, 1
      %s185 = scalar_select %p182, %s183, %s184
      %p188 = pneg %p182
      %p189 = scmp.eq.s32.totalorder %s32, 1
      %p190 = por %p188, %p189
      %p191 = scmp.ne.s32.totalorder %s183, %s186
      %p192 = scmp.eq.s32.totalorder %s32, 0
      %p193 = por %p191, %p192
      %p194 = scmp.ne.s32.totalorder %s183, %s186
      %p195 = scmp.eq.s32.totalorder %s37, 1
      %p196 = por %p194, %p195
      %p197 = scmp.ne.s32.totalorder %s186, %s187
      %p198 = scmp.eq.s32.totalorder %s37, 0
      %p199 = por %p197, %p198
      %p200 = scmp.ne.s32.totalorder %s186, %s187
      %p201 = scmp.eq.s32.totalorder %s38, 1
      %p202 = por %p200, %p201
      %p204 = scmp.ne.s32.totalorder %s187, %s203
      %p205 = scmp.eq.s32.totalorder %s38, 0
      %p206 = por %p204, %p205
      %s207 = ssub.s32 %s32, %s39
      %p208 = scmp.eq.s32.totalorder %s207, 0
      %s210 = sadd.s32 %s209, 1
      %s211 = scalar_select %p208, %s209, %s210
      %p214 = pneg %p208
      %p215 = scmp.eq.s32.totalorder %s32, 1
      %p216 = por %p214, %p215
      %p217 = scmp.ne.s32.totalorder %s209, %s212
      %p218 = scmp.eq.s32.totalorder %s32, 0
      %p219 = por %p217, %p218
      %p220 = scmp.ne.s32.totalorder %s209, %s212
      %p221 = scmp.eq.s32.totalorder %s37, 1
      %p222 = por %p220, %p221
      %p223 = scmp.ne.s32.totalorder %s212, %s213
      %p224 = scmp.eq.s32.totalorder %s37, 0
      %p225 = por %p223, %p224
      %p226 = scmp.ne.s32.totalorder %s212, %s213
      %p227 = scmp.eq.s32.totalorder %s38, 1
      %p228 = por %p226, %p227
      %p230 = scmp.ne.s32.totalorder %s213, %s229
      %p231 = scmp.eq.s32.totalorder %s38, 0
      %p232 = por %p230, %p231
      %s233 = ssub.s32 %s32, %s39
      %p234 = scmp.eq.s32.totalorder %s233, 0
      %s236 = sadd.s32 %s235, 1
      %s237 = scalar_select %p234, %s235, %s236
      %p240 = pneg %p234
      %p241 = scmp.eq.s32.totalorder %s32, 1
      %p242 = por %p240, %p241
      %p243 = scmp.ne.s32.totalorder %s235, %s238
      %p244 = scmp.eq.s32.totalorder %s32, 0
      %p245 = por %p243, %p244
      %p246 = scmp.ne.s32.totalorder %s235, %s238
      %p247 = scmp.eq.s32.totalorder %s37, 1
      %p248 = por %p246, %p247
      %p249 = scmp.ne.s32.totalorder %s238, %s239
      %p250 = scmp.eq.s32.totalorder %s37, 0
      %p251 = por %p249, %p250
      %p252 = scmp.ne.s32.totalorder %s238, %s239
      %p253 = scmp.eq.s32.totalorder %s38, 1
      %p254 = por %p252, %p253
      %p256 = scmp.ne.s32.totalorder %s239, %s255
      %p257 = scmp.eq.s32.totalorder %s38, 0
      %p258 = por %p256, %p257
      %s259 = ssub.s32 %s32, %s39
      %p260 = scmp.eq.s32.totalorder %s259, 0
      %s262 = sadd.s32 %s261, 1
      %s263 = scalar_select %p260, %s261, %s262
      %p266 = pneg %p260
      %p267 = scmp.eq.s32.totalorder %s32, 1
      %p268 = por %p266, %p267
      %p269 = scmp.ne.s32.totalorder %s261, %s264
      %p270 = scmp.eq.s32.totalorder %s32, 0
      %p271 = por %p269, %p270
      %p272 = scmp.ne.s32.totalorder %s261, %s264
      %p273 = scmp.eq.s32.totalorder %s37, 1
      %p274 = por %p272, %p273
      %p275 = scmp.ne.s32.totalorder %s264, %s265
      %p276 = scmp.eq.s32.totalorder %s37, 0
      %p277 = por %p275, %p276
      %p278 = scmp.ne.s32.totalorder %s264, %s265
      %p279 = scmp.eq.s32.totalorder %s38, 1
      %p280 = por %p278, %p279
      %p282 = scmp.ne.s32.totalorder %s265, %s281
      %p283 = scmp.eq.s32.totalorder %s38, 0
      %p284 = por %p282, %p283
      %s285 = ssub.s32 %s32, %s39
      %p286 = scmp.eq.s32.totalorder %s285, 0
      %s288 = sadd.s32 %s287, 1
      %s289 = scalar_select %p286, %s287, %s288
      %p292 = pneg %p286
      %p293 = scmp.eq.s32.totalorder %s32, 1
      %p294 = por %p292, %p293
      %p295 = scmp.ne.s32.totalorder %s287, %s290
      %p296 = scmp.eq.s32.totalorder %s32, 0
      %p297 = por %p295, %p296
      %p298 = scmp.ne.s32.totalorder %s287, %s290
      %p299 = scmp.eq.s32.totalorder %s37, 1
      %p300 = por %p298, %p299
      %p301 = scmp.ne.s32.totalorder %s290, %s291
      %p302 = scmp.eq.s32.totalorder %s37, 0
      %p303 = por %p301, %p302
      %p304 = scmp.ne.s32.totalorder %s290, %s291
      %p305 = scmp.eq.s32.totalorder %s38, 1
      %p306 = por %p304, %p305
      %p308 = scmp.ne.s32.totalorder %s291, %s307
      %p309 = scmp.eq.s32.totalorder %s38, 0
      %p310 = por %p308, %p309
      %s311 = ssub.s32 %s32, %s39
      %p312 = scmp.eq.s32.totalorder %s311, 0
      %s314 = sadd.s32 %s313, 1
      %s315 = scalar_select %p312, %s313, %s314
      %p318 = pneg %p312
      %p319 = scmp.eq.s32.totalorder %s32, 1
      %p320 = por %p318, %p319
      %p321 = scmp.ne.s32.totalorder %s313, %s316
      %p322 = scmp.eq.s32.totalorder %s32, 0
      %p323 = por %p321, %p322
      %p324 = scmp.ne.s32.totalorder %s313, %s316
      %p325 = scmp.eq.s32.totalorder %s37, 1
      %p326 = por %p324, %p325
      %p327 = scmp.ne.s32.totalorder %s316, %s317
      %p328 = scmp.eq.s32.totalorder %s37, 0
      %p329 = por %p327, %p328
      %p330 = scmp.ne.s32.totalorder %s316, %s317
      %p331 = scmp.eq.s32.totalorder %s38, 1
      %p332 = por %p330, %p331
      %p334 = scmp.ne.s32.totalorder %s317, %s333
      %p335 = scmp.eq.s32.totalorder %s38, 0
      %p336 = por %p334, %p335
      %s337 = ssub.s32 %s32, %s39
      %p338 = scmp.eq.s32.totalorder %s337, 0
      %s340 = sadd.s32 %s339, 1
      %s341 = scalar_select %p338, %s339, %s340
      %p344 = pneg %p338
      %p345 = scmp.eq.s32.totalorder %s32, 1
      %p346 = por %p344, %p345
      %p347 = scmp.ne.s32.totalorder %s339, %s342
      %p348 = scmp.eq.s32.totalorder %s32, 0
      %p349 = por %p347, %p348
      %p350 = scmp.ne.s32.totalorder %s339, %s342
      %p351 = scmp.eq.s32.totalorder %s37, 1
      %p352 = por %p350, %p351
      %p353 = scmp.ne.s32.totalorder %s342, %s343
      %p354 = scmp.eq.s32.totalorder %s37, 0
      %p355 = por %p353, %p354
      %p356 = scmp.ne.s32.totalorder %s342, %s343
      %p357 = scmp.eq.s32.totalorder %s38, 1
      %p358 = por %p356, %p357
      %p360 = scmp.ne.s32.totalorder %s343, %s359
      %p361 = scmp.eq.s32.totalorder %s38, 0
      %p362 = por %p360, %p361
      %s363 = ssub.s32 %s32, %s39
      %p364 = scmp.eq.s32.totalorder %s363, 0
      %s366 = sadd.s32 %s365, 1
      %s367 = scalar_select %p364, %s365, %s366
      %p370 = pneg %p364
      %p371 = scmp.eq.s32.totalorder %s32, 1
      %p372 = por %p370, %p371
      %p373 = scmp.ne.s32.totalorder %s365, %s368
      %p374 = scmp.eq.s32.totalorder %s32, 0
      %p375 = por %p373, %p374
      %p376 = scmp.ne.s32.totalorder %s365, %s368
      %p377 = scmp.eq.s32.totalorder %s37, 1
      %p378 = por %p376, %p377
      %p379 = scmp.ne.s32.totalorder %s368, %s369
      %p380 = scmp.eq.s32.totalorder %s37, 0
      %p381 = por %p379, %p380
      %p382 = scmp.ne.s32.totalorder %s368, %s369
      %p383 = scmp.eq.s32.totalorder %s38, 1
      %p384 = por %p382, %p383
      %p386 = scmp.ne.s32.totalorder %s369, %s385
      %p387 = scmp.eq.s32.totalorder %s38, 0
      %p388 = por %p386, %p387
      %s389 = ssub.s32 %s32, %s39
      %p390 = scmp.eq.s32.totalorder %s389, 0
      %s392 = sadd.s32 %s391, 1
      %s393 = scalar_select %p390, %s391, %s392
      %p396 = pneg %p390
      %p397 = scmp.eq.s32.totalorder %s32, 1
      %p398 = por %p396, %p397
      %p399 = scmp.ne.s32.totalorder %s391, %s394
      %p400 = scmp.eq.s32.totalorder %s32, 0
      %p401 = por %p399, %p400
      %p402 = scmp.ne.s32.totalorder %s391, %s394
      %p403 = scmp.eq.s32.totalorder %s37, 1
      %p404 = por %p402, %p403
      %p405 = scmp.ne.s32.totalorder %s394, %s395
      %p406 = scmp.eq.s32.totalorder %s37, 0
      %p407 = por %p405, %p406
      %p408 = scmp.ne.s32.totalorder %s394, %s395
      %p409 = scmp.eq.s32.totalorder %s38, 1
      %p410 = por %p408, %p409
      %p412 = scmp.ne.s32.totalorder %s395, %s411
      %p413 = scmp.eq.s32.totalorder %s38, 0
      %p414 = por %p412, %p413
      %s416 = sadd.s32 %s415, 1
      %p419 = scmp.eq.s32.totalorder %s32, 1
      %p420 = scmp.ne.s32.totalorder %s415, %s417
      %p421 = scmp.eq.s32.totalorder %s32, 0
      %p422 = por %p420, %p421
      %p423 = scmp.ne.s32.totalorder %s415, %s417
      %p424 = scmp.eq.s32.totalorder %s37, 1
      %p425 = por %p423, %p424
      %p426 = scmp.ne.s32.totalorder %s417, %s418
      %p427 = scmp.eq.s32.totalorder %s37, 0
      %p428 = por %p426, %p427
      %p429 = scmp.ne.s32.totalorder %s417, %s418
      %p430 = scmp.eq.s32.totalorder %s38, 1
      %p431 = por %p429, %p430
      %p433 = scmp.ne.s32.totalorder %s418, %s432
      %p434 = scmp.eq.s32.totalorder %s38, 0
      %p435 = por %p433, %p434
      %s437 = sadd.s32 %s436, 1
      %p440 = scmp.eq.s32.totalorder %s32, 1
      %p441 = scmp.ne.s32.totalorder %s436, %s438
      %p442 = scmp.eq.s32.totalorder %s32, 0
      %p443 = por %p441, %p442
      %p444 = scmp.ne.s32.totalorder %s436, %s438
      %p445 = scmp.eq.s32.totalorder %s37, 1
      %p446 = por %p444, %p445
      %p447 = scmp.ne.s32.totalorder %s438, %s439
      %p448 = scmp.eq.s32.totalorder %s37, 0
      %p449 = por %p447, %p448
      %p450 = scmp.ne.s32.totalorder %s438, %s439
      %p451 = scmp.eq.s32.totalorder %s38, 1
      %p452 = por %p450, %p451
      %p454 = scmp.ne.s32.totalorder %s439, %s453
      %p455 = scmp.eq.s32.totalorder %s38, 0
      %p456 = por %p454, %p455
      %s458 = sadd.s32 %s457, 1
      %p461 = scmp.eq.s32.totalorder %s32, 1
      %p462 = scmp.ne.s32.totalorder %s457, %s459
      %p463 = scmp.eq.s32.totalorder %s32, 0
      %p464 = por %p462, %p463
      %p465 = scmp.ne.s32.totalorder %s457, %s459
      %p466 = scmp.eq.s32.totalorder %s37, 1
      %p467 = por %p465, %p466
      %p468 = scmp.ne.s32.totalorder %s459, %s460
      %p469 = scmp.eq.s32.totalorder %s37, 0
      %p470 = por %p468, %p469
      %p471 = scmp.ne.s32.totalorder %s459, %s460
      %p472 = scmp.eq.s32.totalorder %s38, 1
      %p473 = por %p471, %p472
      %p475 = scmp.ne.s32.totalorder %s460, %s474
      %p476 = scmp.eq.s32.totalorder %s38, 0
      %p477 = por %p475, %p476
      %s479 = sadd.s32 %s478, 1
      %p482 = scmp.eq.s32.totalorder %s32, 1
      %p483 = scmp.ne.s32.totalorder %s478, %s480
      %p484 = scmp.eq.s32.totalorder %s32, 0
      %p485 = por %p483, %p484
      %p486 = scmp.ne.s32.totalorder %s478, %s480
      %p487 = scmp.eq.s32.totalorder %s37, 1
      %p488 = por %p486, %p487
      %p489 = scmp.ne.s32.totalorder %s480, %s481
      %p490 = scmp.eq.s32.totalorder %s37, 0
      %p491 = por %p489, %p490
      %p492 = scmp.ne.s32.totalorder %s480, %s481
      %p493 = scmp.eq.s32.totalorder %s38, 1
      %p494 = por %p492, %p493
      %p496 = scmp.ne.s32.totalorder %s481, %s495
      %p497 = scmp.eq.s32.totalorder %s38, 0
      %p498 = por %p496, %p497
      %p499 = scmp.le.s32.totalorder 1, %s32
      %p500 = scmp.lt.s32.totalorder %s32, 3
      %p501 = pnand %p499, %p500
      %p502 = pneg %p501
      // Predicated region
      $region9: #{tpu_custom_call.1} parent=5 // pred_check
        _
      $region10: #{tpu_custom_call.1} parent=5 // pred_check_branch
        %504 = sbr.rel (%p501) target = $region12
      $region11: #{tpu_custom_call.1} parent=5 // pred_region
        %s505 = ssub.s32 %s32, 1
        // Predicated region
        $region13: #{tpu_custom_call.1} parent=11 // pred_check
          %p506 = pneg %p53
        $region14: #{tpu_custom_call.1} parent=11 // pred_check_branch
          %508 = sbr.rel (%p506) target = $region16
        $region15: #{tpu_custom_call.1} parent=11 // pred_region
          _
        $region16: #{tpu_custom_call.1} parent=11 // pred_fallthru
          _
        // Predicated region
        $region17: #{tpu_custom_call.1} parent=11 // pred_check
          %p509 = pneg %p74
        $region18: #{tpu_custom_call.1} parent=11 // pred_check_branch
          %511 = sbr.rel (%p509) target = $region20
        $region19: #{tpu_custom_call.1} parent=11 // pred_region
          _
        $region20: #{tpu_custom_call.1} parent=11 // pred_fallthru
          _
        // Predicated region
        $region21: #{tpu_custom_call.1} parent=11 // pred_check
          %p512 = pneg %p95
        $region22: #{tpu_custom_call.1} parent=11 // pred_check_branch
          %514 = sbr.rel (%p512) target = $region24
        $region23: #{tpu_custom_call.1} parent=11 // pred_region
          _
        $region24: #{tpu_custom_call.1} parent=11 // pred_fallthru
          _
        // Predicated region
        $region25: #{tpu_custom_call.1} parent=11 // pred_check
          %p515 = pneg %p428
        $region26: #{tpu_custom_call.1} parent=11 // pred_check_branch
          %517 = sbr.rel (%p515) target = $region28
        $region27: #{tpu_custom_call.1} parent=11 // pred_region
          _
        $region28: #{tpu_custom_call.1} parent=11 // pred_fallthru
          _
        // Predicated region
        $region29: #{tpu_custom_call.1} parent=11 // pred_check
          %p518 = pneg %p449
        $region30: #{tpu_custom_call.1} parent=11 // pred_check_branch
          %520 = sbr.rel (%p518) target = $region32
        $region31: #{tpu_custom_call.1} parent=11 // pred_region
          _
        $region32: #{tpu_custom_call.1} parent=11 // pred_fallthru
          _
        // Predicated region
        $region33: #{tpu_custom_call.1} parent=11 // pred_check
          %p521 = pneg %p470
        $region34: #{tpu_custom_call.1} parent=11 // pred_check_branch
          %523 = sbr.rel (%p521) target = $region36
        $region35: #{tpu_custom_call.1} parent=11 // pred_region
          _
        $region36: #{tpu_custom_call.1} parent=11 // pred_fallthru
          _
      $region12: #{tpu_custom_call.1} parent=5 // pred_fallthru
        _
      %p524 = scmp.lt.s32.totalorder %s32, 2
      // Predicated region
      $region37: #{tpu_custom_call.1} parent=5 // pred_check
        %p525 = pneg %p524
      $region38: #{tpu_custom_call.1} parent=5 // pred_check_branch
        %527 = sbr.rel (%p525) target = $region40
      $region39: #{tpu_custom_call.1} parent=5 // pred_region
        // Predicated region
        $region41: #{tpu_custom_call.1} parent=39 // pred_check
          %p528 = pneg %p115
        $region42: #{tpu_custom_call.1} parent=39 // pred_check_branch
          %530 = sbr.rel (%p528) target = $region44
        $region43: #{tpu_custom_call.1} parent=39 // pred_region
          %p531 = scmp.lt.s32.totalorder %s32, 1
          %s532 = scalar_select %p531, %s32, 1
          %s533 = scalar_lea.vmem %s4, %s532
        $region44: #{tpu_custom_call.1} parent=39 // pred_fallthru
          _
        // Predicated region
        $region45: #{tpu_custom_call.1} parent=39 // pred_check
          %p534 = pneg %p141
        $region46: #{tpu_custom_call.1} parent=39 // pred_check_branch
          %536 = sbr.rel (%p534) target = $region48
        $region47: #{tpu_custom_call.1} parent=39 // pred_region
          %p537 = scmp.lt.s32.totalorder %s32, 1
          %s538 = scalar_select %p537, %s32, 1
          %s539 = scalar_lea.vmem %s5, %s538
        $region48: #{tpu_custom_call.1} parent=39 // pred_fallthru
          _
        // Predicated region
        $region49: #{tpu_custom_call.1} parent=39 // pred_check
          %p540 = pneg %p167
        $region50: #{tpu_custom_call.1} parent=39 // pred_check_branch
          %542 = sbr.rel (%p540) target = $region52
        $region51: #{tpu_custom_call.1} parent=39 // pred_region
          %p543 = scmp.lt.s32.totalorder %s32, 1
          %s544 = scalar_select %p543, %s32, 1
          %s545 = smul.addr %s544, 4
          %s546 = smul.addr %s545, 8
          %s547 = scalar_lea.vmem %s6, %s546
        $region52: #{tpu_custom_call.1} parent=39 // pred_fallthru
          _
        // Predicated region
        $region53: #{tpu_custom_call.1} parent=39 // pred_check
          %p548 = pneg %p193
        $region54: #{tpu_custom_call.1} parent=39 // pred_check_branch
          %550 = sbr.rel (%p548) target = $region56
        $region55: #{tpu_custom_call.1} parent=39 // pred_region
          %p551 = scmp.lt.s32.totalorder %s32, 1
          %s552 = scalar_select %p551, %s32, 1
          %s553 = scalar_lea.vmem %s7, %s552
        $region56: #{tpu_custom_call.1} parent=39 // pred_fallthru
          _
        // Predicated region
        $region57: #{tpu_custom_call.1} parent=39 // pred_check
          %p554 = pneg %p219
        $region58: #{tpu_custom_call.1} parent=39 // pred_check_branch
          %556 = sbr.rel (%p554) target = $region60
        $region59: #{tpu_custom_call.1} parent=39 // pred_region
          %p557 = scmp.lt.s32.totalorder %s32, 1
          %s558 = scalar_select %p557, %s32, 1
          %s559 = smul.addr %s558, 4
          %s560 = smul.addr %s559, 8
          %s561 = scalar_lea.vmem %s8, %s560
        $region60: #{tpu_custom_call.1} parent=39 // pred_fallthru
          _
        // Predicated region
        $region61: #{tpu_custom_call.1} parent=39 // pred_check
          %p562 = pneg %p245
        $region62: #{tpu_custom_call.1} parent=39 // pred_check_branch
          %564 = sbr.rel (%p562) target = $region64
        $region63: #{tpu_custom_call.1} parent=39 // pred_region
          %p565 = scmp.lt.s32.totalorder %s32, 1
          %s566 = scalar_select %p565, %s32, 1
          %s567 = scalar_lea.vmem %s9, %s566
        $region64: #{tpu_custom_call.1} parent=39 // pred_fallthru
          _
        // Predicated region
        $region65: #{tpu_custom_call.1} parent=39 // pred_check
          %p568 = pneg %p271
        $region66: #{tpu_custom_call.1} parent=39 // pred_check_branch
          %570 = sbr.rel (%p568) target = $region68
        $region67: #{tpu_custom_call.1} parent=39 // pred_region
          %p571 = scmp.lt.s32.totalorder %s32, 1
          %s572 = scalar_select %p571, %s32, 1
          %s573 = scalar_lea.vmem %s10, %s572
        $region68: #{tpu_custom_call.1} parent=39 // pred_fallthru
          _
        // Predicated region
        $region69: #{tpu_custom_call.1} parent=39 // pred_check
          %p574 = pneg %p297
        $region70: #{tpu_custom_call.1} parent=39 // pred_check_branch
          %576 = sbr.rel (%p574) target = $region72
        $region71: #{tpu_custom_call.1} parent=39 // pred_region
          %p577 = scmp.lt.s32.totalorder %s32, 1
          %s578 = scalar_select %p577, %s32, 1
          %s579 = scalar_lea.vmem %s11, %s578
        $region72: #{tpu_custom_call.1} parent=39 // pred_fallthru
          _
        // Predicated region
        $region73: #{tpu_custom_call.1} parent=39 // pred_check
          %p580 = pneg %p323
        $region74: #{tpu_custom_call.1} parent=39 // pred_check_branch
          %582 = sbr.rel (%p580) target = $region76
        $region75: #{tpu_custom_call.1} parent=39 // pred_region
          %p583 = scmp.lt.s32.totalorder %s32, 1
          %s584 = scalar_select %p583, %s32, 1
          %s585 = smul.addr %s584, 4
          %s586 = smul.addr %s585, 8
          %s587 = scalar_lea.vmem %s12, %s586
        $region76: #{tpu_custom_call.1} parent=39 // pred_fallthru
          _
        // Predicated region
        $region77: #{tpu_custom_call.1} parent=39 // pred_check
          %p588 = pneg %p349
        $region78: #{tpu_custom_call.1} parent=39 // pred_check_branch
          %590 = sbr.rel (%p588) target = $region80
        $region79: #{tpu_custom_call.1} parent=39 // pred_region
          %p591 = scmp.lt.s32.totalorder %s32, 1
          %s592 = scalar_select %p591, %s32, 1
          %s593 = scalar_lea.vmem %s13, %s592
        $region80: #{tpu_custom_call.1} parent=39 // pred_fallthru
          _
        // Predicated region
        $region81: #{tpu_custom_call.1} parent=39 // pred_check
          %p594 = pneg %p375
        $region82: #{tpu_custom_call.1} parent=39 // pred_check_branch
          %596 = sbr.rel (%p594) target = $region84
        $region83: #{tpu_custom_call.1} parent=39 // pred_region
          %p597 = scmp.lt.s32.totalorder %s32, 1
          %s598 = scalar_select %p597, %s32, 1
          %s599 = smul.addr %s598, 16
          %s600 = smul.addr %s599, 8
          %s601 = scalar_lea.vmem %s14, %s600
        $region84: #{tpu_custom_call.1} parent=39 // pred_fallthru
          _
        // Predicated region
        $region85: #{tpu_custom_call.1} parent=39 // pred_check
          %p602 = pneg %p401
        $region86: #{tpu_custom_call.1} parent=39 // pred_check_branch
          %604 = sbr.rel (%p602) target = $region88
        $region87: #{tpu_custom_call.1} parent=39 // pred_region
          %p605 = scmp.lt.s32.totalorder %s32, 1
          %s606 = scalar_select %p605, %s32, 1
          %s607 = scalar_lea.vmem %s15, %s606
        $region88: #{tpu_custom_call.1} parent=39 // pred_fallthru
          _
      $region40: #{tpu_custom_call.1} parent=5 // pred_fallthru
        _
      %p608 = scmp.le.s32.totalorder 1, %s32
      %p609 = scmp.lt.s32.totalorder %s32, 3
      %p610 = pnand %p608, %p609
      %p611 = pneg %p610
      // Predicated region
      $region89: #{tpu_custom_call.1} parent=5 // pred_check
        _
      $region90: #{tpu_custom_call.1} parent=5 // pred_check_branch
        %613 = sbr.rel (%p610) target = $region92
      $region91: #{tpu_custom_call.1} parent=5 // pred_region
        %s614 = ssub.s32 %s32, 1
        %p615 = pneg %p53
        %p616 = pneg %p50
        %p617 = pneg %p74
        %p618 = pneg %p71
        %p619 = pneg %p95
        %p620 = pneg %p92
        %p621 = scmp.lt.s32.totalorder %s37, 1
        %s622 = scalar_select %p621, %s37, 1
        %s623 = scalar_lea.vmem %s4, %s622
        %p624 = pneg %p121
        %p625 = pneg %p118
        %p626 = scmp.lt.s32.totalorder %s37, 1
        %s627 = scalar_select %p626, %s37, 1
        %s628 = scalar_lea.vmem %s5, %s627
        %p629 = pneg %p147
        %p630 = pneg %p144
        %p631 = scmp.lt.s32.totalorder %s37, 1
        %s632 = scalar_select %p631, %s37, 1
        %s633 = smul.addr %s632, 4
        %s634 = smul.addr %s633, 8
        %s635 = scalar_lea.vmem %s6, %s634
        %p636 = pneg %p173
        %p637 = pneg %p170
        %p638 = scmp.lt.s32.totalorder %s37, 1
        %s639 = scalar_select %p638, %s37, 1
        %s640 = scalar_lea.vmem %s7, %s639
        %p641 = pneg %p199
        %p642 = pneg %p196
        %p643 = scmp.lt.s32.totalorder %s37, 1
        %s644 = scalar_select %p643, %s37, 1
        %s645 = smul.addr %s644, 4
        %s646 = smul.addr %s645, 8
        %s647 = scalar_lea.vmem %s8, %s646
        %p648 = pneg %p225
        %p649 = pneg %p222
        %p650 = scmp.lt.s32.totalorder %s37, 1
        %s651 = scalar_select %p650, %s37, 1
        %s652 = scalar_lea.vmem %s9, %s651
        %p653 = pneg %p251
        %p654 = pneg %p248
        %p655 = scmp.lt.s32.totalorder %s37, 1
        %s656 = scalar_select %p655, %s37, 1
        %s657 = scalar_lea.vmem %s10, %s656
        %p658 = pneg %p277
        %p659 = pneg %p274
        %p660 = scmp.lt.s32.totalorder %s37, 1
        %s661 = scalar_select %p660, %s37, 1
        %s662 = scalar_lea.vmem %s11, %s661
        %p663 = pneg %p303
        %p664 = pneg %p300
        %p665 = scmp.lt.s32.totalorder %s37, 1
        %s666 = scalar_select %p665, %s37, 1
        %s667 = smul.addr %s666, 4
        %s668 = smul.addr %s667, 8
        %s669 = scalar_lea.vmem %s12, %s668
        %p670 = pneg %p329
        %p671 = pneg %p326
        %p672 = scmp.lt.s32.totalorder %s37, 1
        %s673 = scalar_select %p672, %s37, 1
        %s674 = scalar_lea.vmem %s13, %s673
        %p675 = pneg %p355
        %p676 = pneg %p352
        %p677 = scmp.lt.s32.totalorder %s37, 1
        %s678 = scalar_select %p677, %s37, 1
        %s679 = smul.addr %s678, 16
        %s680 = smul.addr %s679, 8
        %s681 = scalar_lea.vmem %s14, %s680
        %p682 = pneg %p381
        %p683 = pneg %p378
        %p684 = scmp.lt.s32.totalorder %s37, 1
        %s685 = scalar_select %p684, %s37, 1
        %s686 = scalar_lea.vmem %s15, %s685
        %p687 = pneg %p407
        %p688 = pneg %p404
        %p689 = pneg %p428
        %p690 = pneg %p425
        %p691 = pneg %p449
        %p692 = pneg %p446
        %p693 = pneg %p470
        %p694 = pneg %p467
        %p695 = pneg %p491
        %p696 = pneg %p488
        %p697 = scmp.lt.s32.totalorder %s37, 1
        %s698 = scalar_select %p697, %s37, 1
        %s699 = scalar_lea.vmem %s4, %s698
        %p700 = scmp.lt.s32.totalorder %s37, 1
        %s701 = scalar_select %p700, %s37, 1
        %s702 = scalar_lea.vmem %s5, %s701
        %p703 = scmp.lt.s32.totalorder %s37, 1
        %s704 = scalar_select %p703, %s37, 1
        %s705 = smul.addr %s704, 4
        %s706 = smul.addr %s705, 8
        %s707 = scalar_lea.vmem %s6, %s706
        %p708 = scmp.lt.s32.totalorder %s37, 1
        %s709 = scalar_select %p708, %s37, 1
        %s710 = scalar_lea.vmem %s7, %s709
        %p711 = scmp.lt.s32.totalorder %s37, 1
        %s712 = scalar_select %p711, %s37, 1
        %s713 = smul.addr %s712, 4
        %s714 = smul.addr %s713, 8
        %s715 = scalar_lea.vmem %s8, %s714
        %p716 = scmp.lt.s32.totalorder %s37, 1
        %s717 = scalar_select %p716, %s37, 1
        %s718 = scalar_lea.vmem %s9, %s717
        %p719 = scmp.lt.s32.totalorder %s37, 1
        %s720 = scalar_select %p719, %s37, 1
        %s721 = scalar_lea.vmem %s10, %s720
        %p722 = scmp.lt.s32.totalorder %s37, 1
        %s723 = scalar_select %p722, %s37, 1
        %s724 = scalar_lea.vmem %s11, %s723
        %p725 = scmp.lt.s32.totalorder %s37, 1
        %s726 = scalar_select %p725, %s37, 1
        %s727 = smul.addr %s726, 4
        %s728 = smul.addr %s727, 8
        %s729 = scalar_lea.vmem %s12, %s728
        %p730 = scmp.lt.s32.totalorder %s37, 1
        %s731 = scalar_select %p730, %s37, 1
        %s732 = scalar_lea.vmem %s13, %s731
        %p733 = scmp.lt.s32.totalorder %s37, 1
        %s734 = scalar_select %p733, %s37, 1
        %s735 = smul.addr %s734, 16
        %s736 = smul.addr %s735, 8
        %s737 = scalar_lea.vmem %s14, %s736
        %p738 = scmp.lt.s32.totalorder %s37, 1
        %s739 = scalar_select %p738, %s37, 1
        %s740 = scalar_lea.vmem %s15, %s739
        %p741 = scmp.eq.s32.totalorder %s37, 0
        // Predicated region
        $region93: #{tpu_custom_call.1} parent=91 // pred_check
          %p742 = pneg %p741
        $region94: #{tpu_custom_call.1} parent=91 // pred_check_branch
          %744 = sbr.rel (%p742) target = $region96
        $region95: #{tpu_custom_call.1} parent=91 // pred_region
          %v745 = vld [vmem:[%s1] sm:$0xff]
          %v746 = vld [vmem:[%s1 + $0x8] sm:$0xff]
          %v747 = vld [vmem:[%s2] sm:$0xff]
          %v748 = vld [vmem:[%s2 + $0x8] sm:$0xff]
          %v749 = vadd.f32 %v745, %v747
          %v750 = vadd.f32 %v746, %v748
          %vm751 = vcmask 261120
          %752 = vst.msk [vmem:[#allocation2] sm:$0xff] %vm751, %v749
          %753 = vst.msk [vmem:[#allocation2 + $0x8] sm:$0xff] %vm751, %v750
        $region96: #{tpu_custom_call.1} parent=91 // pred_fallthru
          _
        %v754 = vld [vmem:[#allocation2] sm:$0xff]
        %v755 = vld [vmem:[#allocation2 + $0x8] sm:$0xff]
        %v756 = vld [vmem:[%s699] sm:$0x1]
        %v757 = vld [vmem:[%s702] sm:$0x1]
        %vm758 = vcmask 261120
        %v759 = vsel %vm758, %v754, 0.0
        %760 = vadd.xlane.f32.xlu0 %v759
        %v761 = vpop.xlane.xlu0 %760
        %v762 = vsel %vm758, %v755, 0.0
        %763 = vadd.xlane.f32.xlu0 %v762
        %v764 = vpop.xlane.xlu0 %763
        %v765 = vrcp.pop 32.0
        %v766 = vmul.f32 %v761, %v765
        %v767 = vmul.f32 %v764, %v765
        %v768 = vsub.f32 %v754, %v766
        %v769 = vsub.f32 %v755, %v767
        %v770 = vmul.f32 %v768, %v768
        %v771 = vmul.f32 %v769, %v769
        %v772 = vsel %vm758, %v770, 0.0
        %773 = vadd.xlane.f32.xlu0 %v772
        %v774 = vpop.xlane.xlu0 %773
        %v775 = vsel %vm758, %v771, 0.0
        %776 = vadd.xlane.f32.xlu0 %v775
        %v777 = vpop.xlane.xlu0 %776
        %v778 = vmul.f32 %v774, %v765
        %v779 = vmul.f32 %v777, %v765
        %v780 = vadd.f32 %v778, 1e-05
        %v781 = vadd.f32 %v779, 1e-05
        %v782 = vrsqrt.pop %v780
        %v783 = vrsqrt.pop %v781
        %v784 = vmul.f32 %v768, %v782
        %v785 = vmul.f32 %v769, %v783
        %v787 = vlaneseq
        %v788 = vshrl.u32 %v787, 7
        %v789 = vsub.s32 0, %v788
        %v790 = vrot.slane %v756, %v789
        %v792 = vmul.f32 %v784, %v790
        %v793 = vmul.f32 %v785, %v790
        %v795 = vlaneseq
        %v796 = vshrl.u32 %v795, 7
        %v797 = vsub.s32 0, %v796
        %v798 = vrot.slane %v757, %v797
        %v800 = vadd.f32 %v792, %v798
        %v801 = vadd.f32 %v793, %v798
        %v802 = vld [vmem:[%s707] sm:$0xff]
        %v803 = vld [vmem:[%s707 + $0x8] sm:$0xff]
        %v804 = vld [vmem:[%s707 + $0x10] sm:$0xff]
        %v805 = vld [vmem:[%s707 + $0x18] sm:$0xff]
        %v806 = vld [vmem:[%s710] sm:$0x1]
        %v808 = vlaneseq
        %v809 = vshrl.u32 %v808, 7
        %v810 = vsub.s32 0, %v809
        %v811 = vrot.slane %v806, %v810
        %v814 = vsel %vm758, %v800, 0
        %v817 = vsel %vm758, %v801, 0
        %819 = vmatprep.subr.mxu0 0.0
        %820 = vmatpush1.msra.mxu0 %v802
        %821 = vmatprep.subr.mxu0 0.0
        %822 = vmatpush1.msra.mxu0 %v803
        %823 = vmatprep.subr.mxu0 0.0
        %824 = vmatpush1.msra.mxu0 %v804
        %825 = vmatprep.subr.mxu0 0.0
        %826 = vmatpush1.msra.mxu0 %v805
        %827 = vmatprep.subr.mxu0 0.0
        %828 = vmatpush1.msra.mxu0 0.0
        %829 = vmatprep.subr.mxu0 0.0
        %830 = vmatpush1.msra.mxu0 0.0
        %831 = vmatprep.subr.mxu0 0.0
        %832 = vmatpush1.msra.mxu0 0.0
        %833 = vmatprep.subr.mxu0 0.0
        %834 = vmatpush1.msra.mxu0 0.0
        %835 = vmatprep.subr.mxu0 0.0
        %836 = vmatpush1.msra.mxu0 0.0
        %837 = vmatprep.subr.mxu0 0.0
        %838 = vmatpush1.msra.mxu0 0.0
        %839 = vmatprep.subr.mxu0 0.0
        %840 = vmatpush1.msra.mxu0 0.0
        %841 = vmatprep.subr.mxu0 0.0
        %842 = vmatpush1.msra.mxu0 0.0
        %843 = vmatprep.subr.mxu0 0.0
        %844 = vmatpush1.msra.mxu0 0.0
        %845 = vmatprep.subr.mxu0 0.0
        %846 = vmatpush1.msra.mxu0 0.0
        %847 = vmatprep.subr.mxu0 0.0
        %848 = vmatpush1.msra.mxu0 0.0
        %849 = vmatprep.subr.mxu0 0.0
        %850 = vmatpush1.msra.mxu0 0.0
        %851 = vmatprep.subr.mxu0 0.0
        %852 = vmatpush1.msra.mxu0 0.0
        %853 = vmatprep.subr.mxu0 0.0
        %854 = vmatpush1.msra.mxu0 0.0
        %855 = vmatprep.subr.mxu0 0.0
        %856 = vmatpush1.msra.mxu0 0.0
        %857 = vmatprep.subr.mxu0 0.0
        %858 = vmatpush1.msra.mxu0 0.0
        %859 = vmatprep.subr.mxu0 0.0
        %860 = vmatpush1.msra.mxu0 0.0
        %861 = vmatprep.subr.mxu0 0.0
        %862 = vmatpush1.msra.mxu0 0.0
        %863 = vmatprep.subr.mxu0 0.0
        %864 = vmatpush1.msra.mxu0 0.0
        %865 = vmatprep.subr.mxu0 0.0
        %866 = vmatpush1.msra.mxu0 0.0
        %867 = vmatprep.subr.mxu0 0.0
        %868 = vmatpush1.msra.mxu0 0.0
        %869 = vmatprep.subr.mxu0 0.0
        %870 = vmatpush1.msra.mxu0 0.0
        %871 = vmatprep.subr.mxu0 0.0
        %872 = vmatpush1.msra.mxu0 0.0
        %873 = vmatprep.subr.mxu0 0.0
        %874 = vmatpush1.msra.mxu0 0.0
        %875 = vmatprep.subr.mxu0 0.0
        %876 = vmatpush1.msra.mxu0 0.0
        %877 = vmatprep.subr.mxu0 0.0
        %878 = vmatpush1.msra.mxu0 0.0
        %879 = vmatprep.subr.mxu0 0.0
        %880 = vmatpush1.msra.mxu0 0.0
        %881 = vmatprep.subr.mxu0 0.0
        %882 = vmatpush1.msra.mxu0 0.0
        %883 = vmatprep.mubr.f32.mxu0 0.0
        %884 = vmatmul.mubr.f32.gmra.mrb[0].mxu0 %v814
        %v885 = vpop.f32.mrb[0].mxu0
        %v886 = vadd.f32 %v811, %v885
        %v887 = vpop.f32.mrb[0].mxu0
        %888 = vmatprep.mubr.f32.mxu0 0.0
        %889 = vmatmul.mubr.f32.gmra.mrb[0].mxu0 %v817
        %v890 = vpop.f32.mrb[0].mxu0
        %v891 = vadd.f32 %v811, %v890
        %v892 = vpop.f32.mrb[0].mxu0
        %893 = vdwg.mxu0
        %v894 = vld [vmem:[%s715] sm:$0xff]
        %v895 = vld [vmem:[%s715 + $0x8] sm:$0xff]
        %v896 = vld [vmem:[%s715 + $0x10] sm:$0xff]
        %v897 = vld [vmem:[%s715 + $0x18] sm:$0xff]
        %v898 = vld [vmem:[%s3] sm:$0xff]
        %v899 = vld [vmem:[%s3 + $0x8] sm:$0xff]
        %902 = vrot.lane.b32.xlu0 %v886, 96
        %v903 = vpop.permute.xlu0 %902
        %904 = vrot.lane.b32.xlu0 %v891, 96
        %v905 = vpop.permute.xlu0 %904
        %vm906 = vcmask 64512
        %v907 = vsel %vm906, %v886, 0
        %v909 = vsel %vm906, %v891, 0
        %v911 = vsel %vm906, %v903, 0
        %v913 = vsel %vm906, %v905, 0
        %915 = vmatprep.subr.mxu0 0.0
        %916 = vmatpush1.xpose.msra.mxu0 %v911
        %917 = vmatprep.subr.mxu0 0.0
        %918 = vmatpush1.xpose.msra.mxu0 %v913
        %919 = vmatprep.subr.mxu0 0.0
        %920 = vmatpush1.xpose.msra.mxu0 0.0
        %921 = vmatprep.subr.mxu0 0.0
        %922 = vmatpush1.xpose.msra.mxu0 0.0
        %923 = vmatprep.subr.mxu0 0.0
        %924 = vmatpush1.xpose.msra.mxu0 0.0
        %925 = vmatprep.subr.mxu0 0.0
        %926 = vmatpush1.xpose.msra.mxu0 0.0
        %927 = vmatprep.subr.mxu0 0.0
        %928 = vmatpush1.xpose.msra.mxu0 0.0
        %929 = vmatprep.subr.mxu0 0.0
        %930 = vmatpush1.xpose.msra.mxu0 0.0
        %931 = vmatprep.subr.mxu0 0.0
        %932 = vmatpush1.xpose.msra.mxu0 0.0
        %933 = vmatprep.subr.mxu0 0.0
        %934 = vmatpush1.xpose.msra.mxu0 0.0
        %935 = vmatprep.subr.mxu0 0.0
        %936 = vmatpush1.xpose.msra.mxu0 0.0
        %937 = vmatprep.subr.mxu0 0.0
        %938 = vmatpush1.xpose.msra.mxu0 0.0
        %939 = vmatprep.subr.mxu0 0.0
        %940 = vmatpush1.xpose.msra.mxu0 0.0
        %941 = vmatprep.subr.mxu0 0.0
        %942 = vmatpush1.xpose.msra.mxu0 0.0
        %943 = vmatprep.subr.mxu0 0.0
        %944 = vmatpush1.xpose.msra.mxu0 0.0
        %945 = vmatprep.subr.mxu0 0.0
        %946 = vmatpush1.xpose.msra.mxu0 0.0
        %947 = vmatprep.subr.mxu0 0.0
        %948 = vmatpush1.xpose.msra.mxu0 0.0
        %949 = vmatprep.subr.mxu0 0.0
        %950 = vmatpush1.xpose.msra.mxu0 0.0
        %951 = vmatprep.subr.mxu0 0.0
        %952 = vmatpush1.xpose.msra.mxu0 0.0
        %953 = vmatprep.subr.mxu0 0.0
        %954 = vmatpush1.xpose.msra.mxu0 0.0
        %955 = vmatprep.subr.mxu0 0.0
        %956 = vmatpush1.xpose.msra.mxu0 0.0
        %957 = vmatprep.subr.mxu0 0.0
        %958 = vmatpush1.xpose.msra.mxu0 0.0
        %959 = vmatprep.subr.mxu0 0.0
        %960 = vmatpush1.xpose.msra.mxu0 0.0
        %961 = vmatprep.subr.mxu0 0.0
        %962 = vmatpush1.xpose.msra.mxu0 0.0
        %963 = vmatprep.subr.mxu0 0.0
        %964 = vmatpush1.xpose.msra.mxu0 0.0
        %965 = vmatprep.subr.mxu0 0.0
        %966 = vmatpush1.xpose.msra.mxu0 0.0
        %967 = vmatprep.subr.mxu0 0.0
        %968 = vmatpush1.xpose.msra.mxu0 0.0
        %969 = vmatprep.subr.mxu0 0.0
        %970 = vmatpush1.xpose.msra.mxu0 0.0
        %971 = vmatprep.subr.mxu0 0.0
        %972 = vmatpush1.xpose.msra.mxu0 0.0
        %973 = vmatprep.subr.mxu0 0.0
        %974 = vmatpush1.xpose.msra.mxu0 0.0
        %975 = vmatprep.subr.mxu0 0.0
        %976 = vmatpush1.xpose.msra.mxu0 0.0
        %977 = vmatprep.subr.mxu0 0.0
        %978 = vmatpush1.xpose.msra.mxu0 0.0
        %979 = vmatprep.mubr.f32.mxu0 0.0
        %980 = vmatmul.mubr.f32.gmra.mrb[0].mxu0 %v907
        %v981 = vpop.f32.mrb[0].mxu0
        %v982 = vadd.f32 0.0, %v981
        %v983 = vpop.f32.mrb[0].mxu0
        %984 = vmatprep.mubr.f32.mxu0 0.0
        %985 = vmatmul.mubr.f32.gmra.mrb[0].mxu0 %v909
        %v986 = vpop.f32.mrb[0].mxu0
        %v987 = vadd.f32 0.0, %v986
        %v988 = vpop.f32.mrb[0].mxu0
        %989 = vdwg.mxu0
        %v990 = vmul.f32 %v982, 0.35355338
        %v991 = vmul.f32 %v987, 0.35355338
        %v992 = vadd.f32 %v990, %v898
        %v993 = vadd.f32 %v991, %v899
        %vm994 = vcmask 130048
        %v995 = vsel %vm994, %v992, -inf
        %996 = vmax.xlane.f32.xlu0 %v995
        %v997 = vpop.xlane.xlu0 %996
        %v998 = vsel %vm994, %v993, -inf
        %999 = vmax.xlane.f32.xlu0 %v998
        %v1000 = vpop.xlane.xlu0 %999
        %v1001 = vsub.f32 %v992, %v997
        %v1002 = vsub.f32 %v993, %v1000
        %v1003 = vmul.f32 %v1001, 1.442695
        %v1004 = vpow.pop %v1003
        %v1005 = vmul.f32 %v1002, 1.442695
        %v1006 = vpow.pop %v1005
        %v1007 = vsel %vm994, %v1004, 0.0
        %1008 = vadd.xlane.f32.xlu0 %v1007
        %v1009 = vpop.xlane.xlu0 %1008
        %v1010 = vsel %vm994, %v1006, 0.0
        %1011 = vadd.xlane.f32.xlu0 %v1010
        %v1012 = vpop.xlane.xlu0 %1011
        %v1013 = vrcp.pop %v1009
        %v1014 = vrcp.pop %v1012
        %v1015 = vmul.f32 %v1004, %v1013
        %v1016 = vmul.f32 %v1006, %v1014
        %1017 = vrot.lane.b32.xlu0 %v886, 64
        %v1018 = vpop.permute.xlu0 %1017
        %1019 = vrot.lane.b32.xlu0 %v891, 64
        %v1020 = vpop.permute.xlu0 %1019
        %v1024 = vsel %vm994, %v1015, 0
        %v1027 = vsel %vm994, %v1016, 0
        %1029 = vmatprep.subr.mxu0 0.0
        %1030 = vmatpush1.msra.mxu0 %v1018
        %1031 = vmatprep.subr.mxu0 0.0
        %1032 = vmatpush1.msra.mxu0 %v1020
        %1033 = vmatprep.subr.mxu0 0.0
        %1034 = vmatpush1.msra.mxu0 0.0
        %1035 = vmatprep.subr.mxu0 0.0
        %1036 = vmatpush1.msra.mxu0 0.0
        %1037 = vmatprep.subr.mxu0 0.0
        %1038 = vmatpush1.msra.mxu0 0.0
        %1039 = vmatprep.subr.mxu0 0.0
        %1040 = vmatpush1.msra.mxu0 0.0
        %1041 = vmatprep.subr.mxu0 0.0
        %1042 = vmatpush1.msra.mxu0 0.0
        %1043 = vmatprep.subr.mxu0 0.0
        %1044 = vmatpush1.msra.mxu0 0.0
        %1045 = vmatprep.subr.mxu0 0.0
        %1046 = vmatpush1.msra.mxu0 0.0
        %1047 = vmatprep.subr.mxu0 0.0
        %1048 = vmatpush1.msra.mxu0 0.0
        %1049 = vmatprep.subr.mxu0 0.0
        %1050 = vmatpush1.msra.mxu0 0.0
        %1051 = vmatprep.subr.mxu0 0.0
        %1052 = vmatpush1.msra.mxu0 0.0
        %1053 = vmatprep.subr.mxu0 0.0
        %1054 = vmatpush1.msra.mxu0 0.0
        %1055 = vmatprep.subr.mxu0 0.0
        %1056 = vmatpush1.msra.mxu0 0.0
        %1057 = vmatprep.subr.mxu0 0.0
        %1058 = vmatpush1.msra.mxu0 0.0
        %1059 = vmatprep.subr.mxu0 0.0
        %1060 = vmatpush1.msra.mxu0 0.0
        %1061 = vmatprep.subr.mxu0 0.0
        %1062 = vmatpush1.msra.mxu0 0.0
        %1063 = vmatprep.subr.mxu0 0.0
        %1064 = vmatpush1.msra.mxu0 0.0
        %1065 = vmatprep.subr.mxu0 0.0
        %1066 = vmatpush1.msra.mxu0 0.0
        %1067 = vmatprep.subr.mxu0 0.0
        %1068 = vmatpush1.msra.mxu0 0.0
        %1069 = vmatprep.subr.mxu0 0.0
        %1070 = vmatpush1.msra.mxu0 0.0
        %1071 = vmatprep.subr.mxu0 0.0
        %1072 = vmatpush1.msra.mxu0 0.0
        %1073 = vmatprep.subr.mxu0 0.0
        %1074 = vmatpush1.msra.mxu0 0.0
        %1075 = vmatprep.subr.mxu0 0.0
        %1076 = vmatpush1.msra.mxu0 0.0
        %1077 = vmatprep.subr.mxu0 0.0
        %1078 = vmatpush1.msra.mxu0 0.0
        %1079 = vmatprep.subr.mxu0 0.0
        %1080 = vmatpush1.msra.mxu0 0.0
        %1081 = vmatprep.subr.mxu0 0.0
        %1082 = vmatpush1.msra.mxu0 0.0
        %1083 = vmatprep.subr.mxu0 0.0
        %1084 = vmatpush1.msra.mxu0 0.0
        %1085 = vmatprep.subr.mxu0 0.0
        %1086 = vmatpush1.msra.mxu0 0.0
        %1087 = vmatprep.subr.mxu0 0.0
        %1088 = vmatpush1.msra.mxu0 0.0
        %1089 = vmatprep.subr.mxu0 0.0
        %1090 = vmatpush1.msra.mxu0 0.0
        %1091 = vmatprep.subr.mxu0 0.0
        %1092 = vmatpush1.msra.mxu0 0.0
        %1093 = vmatprep.mubr.f32.mxu0 0.0
        %1094 = vmatmul.mubr.f32.gmra.mrb[0].mxu0 %v1024
        %v1095 = vpop.f32.mrb[0].mxu0
        %v1096 = vadd.f32 0.0, %v1095
        %v1097 = vpop.f32.mrb[0].mxu0
        %1098 = vmatprep.mubr.f32.mxu0 0.0
        %1099 = vmatmul.mubr.f32.gmra.mrb[0].mxu0 %v1027
        %v1100 = vpop.f32.mrb[0].mxu0
        %v1101 = vadd.f32 0.0, %v1100
        %v1102 = vpop.f32.mrb[0].mxu0
        %1103 = vdwg.mxu0
        %1104 = vrot.lane.b32.xlu0 %v886, 120
        %v1105 = vpop.permute.xlu0 %1104
        %1106 = vrot.lane.b32.xlu0 %v891, 120
        %v1107 = vpop.permute.xlu0 %1106
        %1108 = vrot.lane.b32.xlu0 %v886, 88
        %v1109 = vpop.permute.xlu0 %1108
        %1110 = vrot.lane.b32.xlu0 %v891, 88
        %v1111 = vpop.permute.xlu0 %1110
        %v1112 = vsel %vm906, %v1105, 0
        %v1114 = vsel %vm906, %v1107, 0
        %v1116 = vsel %vm906, %v1109, 0
        %v1118 = vsel %vm906, %v1111, 0
        %1120 = vmatprep.subr.mxu0 0.0
        %1121 = vmatpush1.xpose.msra.mxu0 %v1116
        %1122 = vmatprep.subr.mxu0 0.0
        %1123 = vmatpush1.xpose.msra.mxu0 %v1118
        %1124 = vmatprep.subr.mxu0 0.0
        %1125 = vmatpush1.xpose.msra.mxu0 0.0
        %1126 = vmatprep.subr.mxu0 0.0
        %1127 = vmatpush1.xpose.msra.mxu0 0.0
        %1128 = vmatprep.subr.mxu0 0.0
        %1129 = vmatpush1.xpose.msra.mxu0 0.0
        %1130 = vmatprep.subr.mxu0 0.0
        %1131 = vmatpush1.xpose.msra.mxu0 0.0
        %1132 = vmatprep.subr.mxu0 0.0
        %1133 = vmatpush1.xpose.msra.mxu0 0.0
        %1134 = vmatprep.subr.mxu0 0.0
        %1135 = vmatpush1.xpose.msra.mxu0 0.0
        %1136 = vmatprep.subr.mxu0 0.0
        %1137 = vmatpush1.xpose.msra.mxu0 0.0
        %1138 = vmatprep.subr.mxu0 0.0
        %1139 = vmatpush1.xpose.msra.mxu0 0.0
        %1140 = vmatprep.subr.mxu0 0.0
        %1141 = vmatpush1.xpose.msra.mxu0 0.0
        %1142 = vmatprep.subr.mxu0 0.0
        %1143 = vmatpush1.xpose.msra.mxu0 0.0
        %1144 = vmatprep.subr.mxu0 0.0
        %1145 = vmatpush1.xpose.msra.mxu0 0.0
        %1146 = vmatprep.subr.mxu0 0.0
        %1147 = vmatpush1.xpose.msra.mxu0 0.0
        %1148 = vmatprep.subr.mxu0 0.0
        %1149 = vmatpush1.xpose.msra.mxu0 0.0
        %1150 = vmatprep.subr.mxu0 0.0
        %1151 = vmatpush1.xpose.msra.mxu0 0.0
        %1152 = vmatprep.subr.mxu0 0.0
        %1153 = vmatpush1.xpose.msra.mxu0 0.0
        %1154 = vmatprep.subr.mxu0 0.0
        %1155 = vmatpush1.xpose.msra.mxu0 0.0
        %1156 = vmatprep.subr.mxu0 0.0
        %1157 = vmatpush1.xpose.msra.mxu0 0.0
        %1158 = vmatprep.subr.mxu0 0.0
        %1159 = vmatpush1.xpose.msra.mxu0 0.0
        %1160 = vmatprep.subr.mxu0 0.0
        %1161 = vmatpush1.xpose.msra.mxu0 0.0
        %1162 = vmatprep.subr.mxu0 0.0
        %1163 = vmatpush1.xpose.msra.mxu0 0.0
        %1164 = vmatprep.subr.mxu0 0.0
        %1165 = vmatpush1.xpose.msra.mxu0 0.0
        %1166 = vmatprep.subr.mxu0 0.0
        %1167 = vmatpush1.xpose.msra.mxu0 0.0
        %1168 = vmatprep.subr.mxu0 0.0
        %1169 = vmatpush1.xpose.msra.mxu0 0.0
        %1170 = vmatprep.subr.mxu0 0.0
        %1171 = vmatpush1.xpose.msra.mxu0 0.0
        %1172 = vmatprep.subr.mxu0 0.0
        %1173 = vmatpush1.xpose.msra.mxu0 0.0
        %1174 = vmatprep.subr.mxu0 0.0
        %1175 = vmatpush1.xpose.msra.mxu0 0.0
        %1176 = vmatprep.subr.mxu0 0.0
        %1177 = vmatpush1.xpose.msra.mxu0 0.0
        %1178 = vmatprep.subr.mxu0 0.0
        %1179 = vmatpush1.xpose.msra.mxu0 0.0
        %1180 = vmatprep.subr.mxu0 0.0
        %1181 = vmatpush1.xpose.msra.mxu0 0.0
        %1182 = vmatprep.subr.mxu0 0.0
        %1183 = vmatpush1.xpose.msra.mxu0 0.0
        %1184 = vmatprep.mubr.f32.mxu0 0.0
        %1185 = vmatmul.mubr.f32.gmra.mrb[0].mxu0 %v1112
        %v1186 = vpop.f32.mrb[0].mxu0
        %v1187 = vadd.f32 0.0, %v1186
        %v1188 = vpop.f32.mrb[0].mxu0
        %1189 = vmatprep.mubr.f32.mxu0 0.0
        %1190 = vmatmul.mubr.f32.gmra.mrb[0].mxu0 %v1114
        %v1191 = vpop.f32.mrb[0].mxu0
        %v1192 = vadd.f32 0.0, %v1191
        %v1193 = vpop.f32.mrb[0].mxu0
        %1194 = vdwg.mxu0
        %v1195 = vmul.f32 %v1187, 0.35355338
        %v1196 = vmul.f32 %v1192, 0.35355338
        %v1197 = vadd.f32 %v1195, %v898
        %v1198 = vadd.f32 %v1196, %v899
        %v1199 = vsel %vm994, %v1197, -inf
        %1200 = vmax.xlane.f32.xlu0 %v1199
        %v1201 = vpop.xlane.xlu0 %1200
        %v1202 = vsel %vm994, %v1198, -inf
        %1203 = vmax.xlane.f32.xlu0 %v1202
        %v1204 = vpop.xlane.xlu0 %1203
        %v1205 = vsub.f32 %v1197, %v1201
        %v1206 = vsub.f32 %v1198, %v1204
        %v1207 = vmul.f32 %v1205, 1.442695
        %v1208 = vpow.pop %v1207
        %v1209 = vmul.f32 %v1206, 1.442695
        %v1210 = vpow.pop %v1209
        %v1211 = vsel %vm994, %v1208, 0.0
        %1212 = vadd.xlane.f32.xlu0 %v1211
        %v1213 = vpop.xlane.xlu0 %1212
        %v1214 = vsel %vm994, %v1210, 0.0
        %1215 = vadd.xlane.f32.xlu0 %v1214
        %v1216 = vpop.xlane.xlu0 %1215
        %v1217 = vrcp.pop %v1213
        %v1218 = vrcp.pop %v1216
        %v1219 = vmul.f32 %v1208, %v1217
        %v1220 = vmul.f32 %v1210, %v1218
        %1221 = vrot.lane.b32.xlu0 %v886, 56
        %v1222 = vpop.permute.xlu0 %1221
        %1223 = vrot.lane.b32.xlu0 %v891, 56
        %v1224 = vpop.permute.xlu0 %1223
        %v1228 = vsel %vm994, %v1219, 0
        %v1231 = vsel %vm994, %v1220, 0
        %1233 = vmatprep.subr.mxu0 0.0
        %1234 = vmatpush1.msra.mxu0 %v1222
        %1235 = vmatprep.subr.mxu0 0.0
        %1236 = vmatpush1.msra.mxu0 %v1224
        %1237 = vmatprep.subr.mxu0 0.0
        %1238 = vmatpush1.msra.mxu0 0.0
        %1239 = vmatprep.subr.mxu0 0.0
        %1240 = vmatpush1.msra.mxu0 0.0
        %1241 = vmatprep.subr.mxu0 0.0
        %1242 = vmatpush1.msra.mxu0 0.0
        %1243 = vmatprep.subr.mxu0 0.0
        %1244 = vmatpush1.msra.mxu0 0.0
        %1245 = vmatprep.subr.mxu0 0.0
        %1246 = vmatpush1.msra.mxu0 0.0
        %1247 = vmatprep.subr.mxu0 0.0
        %1248 = vmatpush1.msra.mxu0 0.0
        %1249 = vmatprep.subr.mxu0 0.0
        %1250 = vmatpush1.msra.mxu0 0.0
        %1251 = vmatprep.subr.mxu0 0.0
        %1252 = vmatpush1.msra.mxu0 0.0
        %1253 = vmatprep.subr.mxu0 0.0
        %1254 = vmatpush1.msra.mxu0 0.0
        %1255 = vmatprep.subr.mxu0 0.0
        %1256 = vmatpush1.msra.mxu0 0.0
        %1257 = vmatprep.subr.mxu0 0.0
        %1258 = vmatpush1.msra.mxu0 0.0
        %1259 = vmatprep.subr.mxu0 0.0
        %1260 = vmatpush1.msra.mxu0 0.0
        %1261 = vmatprep.subr.mxu0 0.0
        %1262 = vmatpush1.msra.mxu0 0.0
        %1263 = vmatprep.subr.mxu0 0.0
        %1264 = vmatpush1.msra.mxu0 0.0
        %1265 = vmatprep.subr.mxu0 0.0
        %1266 = vmatpush1.msra.mxu0 0.0
        %1267 = vmatprep.subr.mxu0 0.0
        %1268 = vmatpush1.msra.mxu0 0.0
        %1269 = vmatprep.subr.mxu0 0.0
        %1270 = vmatpush1.msra.mxu0 0.0
        %1271 = vmatprep.subr.mxu0 0.0
        %1272 = vmatpush1.msra.mxu0 0.0
        %1273 = vmatprep.subr.mxu0 0.0
        %1274 = vmatpush1.msra.mxu0 0.0
        %1275 = vmatprep.subr.mxu0 0.0
        %1276 = vmatpush1.msra.mxu0 0.0
        %1277 = vmatprep.subr.mxu0 0.0
        %1278 = vmatpush1.msra.mxu0 0.0
        %1279 = vmatprep.subr.mxu0 0.0
        %1280 = vmatpush1.msra.mxu0 0.0
        %1281 = vmatprep.subr.mxu0 0.0
        %1282 = vmatpush1.msra.mxu0 0.0
        %1283 = vmatprep.subr.mxu0 0.0
        %1284 = vmatpush1.msra.mxu0 0.0
        %1285 = vmatprep.subr.mxu0 0.0
        %1286 = vmatpush1.msra.mxu0 0.0
        %1287 = vmatprep.subr.mxu0 0.0
        %1288 = vmatpush1.msra.mxu0 0.0
        %1289 = vmatprep.subr.mxu0 0.0
        %1290 = vmatpush1.msra.mxu0 0.0
        %1291 = vmatprep.subr.mxu0 0.0
        %1292 = vmatpush1.msra.mxu0 0.0
        %1293 = vmatprep.subr.mxu0 0.0
        %1294 = vmatpush1.msra.mxu0 0.0
        %1295 = vmatprep.subr.mxu0 0.0
        %1296 = vmatpush1.msra.mxu0 0.0
        %1297 = vmatprep.mubr.f32.mxu0 0.0
        %1298 = vmatmul.mubr.f32.gmra.mrb[0].mxu0 %v1228
        %v1299 = vpop.f32.mrb[0].mxu0
        %v1300 = vadd.f32 0.0, %v1299
        %v1301 = vpop.f32.mrb[0].mxu0
        %1302 = vmatprep.mubr.f32.mxu0 0.0
        %1303 = vmatmul.mubr.f32.gmra.mrb[0].mxu0 %v1231
        %v1304 = vpop.f32.mrb[0].mxu0
        %v1305 = vadd.f32 0.0, %v1304
        %v1306 = vpop.f32.mrb[0].mxu0
        %1307 = vdwg.mxu0
        %v1309 = vsel %vm906, %v1300, 0
        %v1312 = vsel %vm906, %v1305, 0
        %1314 = vmatprep.subr.mxu0 0.0
        %1315 = vmatpush1.msra.mxu0 %v895
        %1316 = vmatprep.subr.mxu0 0.0
        %1317 = vmatpush1.msra.mxu0 0.0
        %1318 = vmatprep.subr.mxu0 0.0
        %1319 = vmatpush1.msra.mxu0 0.0
        %1320 = vmatprep.subr.mxu0 0.0
        %1321 = vmatpush1.msra.mxu0 0.0
        %1322 = vmatprep.subr.mxu0 0.0
        %1323 = vmatpush1.msra.mxu0 0.0
        %1324 = vmatprep.subr.mxu0 0.0
        %1325 = vmatpush1.msra.mxu0 0.0
        %1326 = vmatprep.subr.mxu0 0.0
        %1327 = vmatpush1.msra.mxu0 0.0
        %1328 = vmatprep.subr.mxu0 0.0
        %1329 = vmatpush1.msra.mxu0 0.0
        %1330 = vmatprep.subr.mxu0 0.0
        %1331 = vmatpush1.msra.mxu0 0.0
        %1332 = vmatprep.subr.mxu0 0.0
        %1333 = vmatpush1.msra.mxu0 0.0
        %1334 = vmatprep.subr.mxu0 0.0
        %1335 = vmatpush1.msra.mxu0 0.0
        %1336 = vmatprep.subr.mxu0 0.0
        %1337 = vmatpush1.msra.mxu0 0.0
        %1338 = vmatprep.subr.mxu0 0.0
        %1339 = vmatpush1.msra.mxu0 0.0
        %1340 = vmatprep.subr.mxu0 0.0
        %1341 = vmatpush1.msra.mxu0 0.0
        %1342 = vmatprep.subr.mxu0 0.0
        %1343 = vmatpush1.msra.mxu0 0.0
        %1344 = vmatprep.subr.mxu0 0.0
        %1345 = vmatpush1.msra.mxu0 0.0
        %1346 = vmatprep.subr.mxu0 0.0
        %1347 = vmatpush1.msra.mxu0 0.0
        %1348 = vmatprep.subr.mxu0 0.0
        %1349 = vmatpush1.msra.mxu0 0.0
        %1350 = vmatprep.subr.mxu0 0.0
        %1351 = vmatpush1.msra.mxu0 0.0
        %1352 = vmatprep.subr.mxu0 0.0
        %1353 = vmatpush1.msra.mxu0 0.0
        %1354 = vmatprep.subr.mxu0 0.0
        %1355 = vmatpush1.msra.mxu0 0.0
        %1356 = vmatprep.subr.mxu0 0.0
        %1357 = vmatpush1.msra.mxu0 0.0
        %1358 = vmatprep.subr.mxu0 0.0
        %1359 = vmatpush1.msra.mxu0 0.0
        %1360 = vmatprep.subr.mxu0 0.0
        %1361 = vmatpush1.msra.mxu0 0.0
        %1362 = vmatprep.subr.mxu0 0.0
        %1363 = vmatpush1.msra.mxu0 0.0
        %1364 = vmatprep.subr.mxu0 0.0
        %1365 = vmatpush1.msra.mxu0 0.0
        %1366 = vmatprep.subr.mxu0 0.0
        %1367 = vmatpush1.msra.mxu0 0.0
        %1368 = vmatprep.subr.mxu0 0.0
        %1369 = vmatpush1.msra.mxu0 0.0
        %1370 = vmatprep.subr.mxu0 0.0
        %1371 = vmatpush1.msra.mxu0 0.0
        %1372 = vmatprep.subr.mxu0 0.0
        %1373 = vmatpush1.msra.mxu0 0.0
        %1374 = vmatprep.subr.mxu0 0.0
        %1375 = vmatpush1.msra.mxu0 0.0
        %1376 = vmatprep.subr.mxu0 0.0
        %1377 = vmatpush1.msra.mxu0 0.0
        %1378 = vmatprep.mubr.f32.mxu0 0.0
        %1379 = vmatmul.mubr.f32.gmra.mrb[0].mxu0 %v1309
        %v1380 = vpop.f32.mrb[0].mxu0
        %v1381 = vadd.f32 0.0, %v1380
        %v1382 = vpop.f32.mrb[0].mxu0
        %1383 = vmatprep.mubr.f32.mxu0 0.0
        %1384 = vmatmul.mubr.f32.gmra.mrb[0].mxu0 %v1312
        %v1385 = vpop.f32.mrb[0].mxu0
        %v1386 = vadd.f32 0.0, %v1385
        %v1387 = vpop.f32.mrb[0].mxu0
        %1388 = vdwg.mxu0
        %v1390 = vsel %vm906, %v1096, 0
        %v1393 = vsel %vm906, %v1101, 0
        %1395 = vmatprep.subr.mxu0 0.0
        %1396 = vmatpush1.msra.mxu0 %v894
        %1397 = vmatprep.subr.mxu0 0.0
        %1398 = vmatpush1.msra.mxu0 0.0
        %1399 = vmatprep.subr.mxu0 0.0
        %1400 = vmatpush1.msra.mxu0 0.0
        %1401 = vmatprep.subr.mxu0 0.0
        %1402 = vmatpush1.msra.mxu0 0.0
        %1403 = vmatprep.subr.mxu0 0.0
        %1404 = vmatpush1.msra.mxu0 0.0
        %1405 = vmatprep.subr.mxu0 0.0
        %1406 = vmatpush1.msra.mxu0 0.0
        %1407 = vmatprep.subr.mxu0 0.0
        %1408 = vmatpush1.msra.mxu0 0.0
        %1409 = vmatprep.subr.mxu0 0.0
        %1410 = vmatpush1.msra.mxu0 0.0
        %1411 = vmatprep.subr.mxu0 0.0
        %1412 = vmatpush1.msra.mxu0 0.0
        %1413 = vmatprep.subr.mxu0 0.0
        %1414 = vmatpush1.msra.mxu0 0.0
        %1415 = vmatprep.subr.mxu0 0.0
        %1416 = vmatpush1.msra.mxu0 0.0
        %1417 = vmatprep.subr.mxu0 0.0
        %1418 = vmatpush1.msra.mxu0 0.0
        %1419 = vmatprep.subr.mxu0 0.0
        %1420 = vmatpush1.msra.mxu0 0.0
        %1421 = vmatprep.subr.mxu0 0.0
        %1422 = vmatpush1.msra.mxu0 0.0
        %1423 = vmatprep.subr.mxu0 0.0
        %1424 = vmatpush1.msra.mxu0 0.0
        %1425 = vmatprep.subr.mxu0 0.0
        %1426 = vmatpush1.msra.mxu0 0.0
        %1427 = vmatprep.subr.mxu0 0.0
        %1428 = vmatpush1.msra.mxu0 0.0
        %1429 = vmatprep.subr.mxu0 0.0
        %1430 = vmatpush1.msra.mxu0 0.0
        %1431 = vmatprep.subr.mxu0 0.0
        %1432 = vmatpush1.msra.mxu0 0.0
        %1433 = vmatprep.subr.mxu0 0.0
        %1434 = vmatpush1.msra.mxu0 0.0
        %1435 = vmatprep.subr.mxu0 0.0
        %1436 = vmatpush1.msra.mxu0 0.0
        %1437 = vmatprep.subr.mxu0 0.0
        %1438 = vmatpush1.msra.mxu0 0.0
        %1439 = vmatprep.subr.mxu0 0.0
        %1440 = vmatpush1.msra.mxu0 0.0
        %1441 = vmatprep.subr.mxu0 0.0
        %1442 = vmatpush1.msra.mxu0 0.0
        %1443 = vmatprep.subr.mxu0 0.0
        %1444 = vmatpush1.msra.mxu0 0.0
        %1445 = vmatprep.subr.mxu0 0.0
        %1446 = vmatpush1.msra.mxu0 0.0
        %1447 = vmatprep.subr.mxu0 0.0
        %1448 = vmatpush1.msra.mxu0 0.0
        %1449 = vmatprep.subr.mxu0 0.0
        %1450 = vmatpush1.msra.mxu0 0.0
        %1451 = vmatprep.subr.mxu0 0.0
        %1452 = vmatpush1.msra.mxu0 0.0
        %1453 = vmatprep.subr.mxu0 0.0
        %1454 = vmatpush1.msra.mxu0 0.0
        %1455 = vmatprep.subr.mxu0 0.0
        %1456 = vmatpush1.msra.mxu0 0.0
        %1457 = vmatprep.subr.mxu0 0.0
        %1458 = vmatpush1.msra.mxu0 0.0
        %1459 = vmatprep.mubr.f32.mxu0 0.0
        %1460 = vmatmul.mubr.f32.gmra.mrb[0].mxu0 %v1390
        %v1461 = vpop.f32.mrb[0].mxu0
        %v1462 = vadd.f32 %v1381, %v1461
        %v1463 = vpop.f32.mrb[0].mxu0
        %1464 = vmatprep.mubr.f32.mxu0 0.0
        %1465 = vmatmul.mubr.f32.gmra.mrb[0].mxu0 %v1393
        %v1466 = vpop.f32.mrb[0].mxu0
        %v1467 = vadd.f32 %v1386, %v1466
        %v1468 = vpop.f32.mrb[0].mxu0
        %1469 = vdwg.mxu0
        %1470 = vrot.lane.b32.xlu0 %v886, 112
        %v1471 = vpop.permute.xlu0 %1470
        %1472 = vrot.lane.b32.xlu0 %v891, 112
        %v1473 = vpop.permute.xlu0 %1472
        %1474 = vrot.lane.b32.xlu0 %v886, 80
        %v1475 = vpop.permute.xlu0 %1474
        %1476 = vrot.lane.b32.xlu0 %v891, 80
        %v1477 = vpop.permute.xlu0 %1476
        %v1478 = vsel %vm906, %v1471, 0
        %v1480 = vsel %vm906, %v1473, 0
        %v1482 = vsel %vm906, %v1475, 0
        %v1484 = vsel %vm906, %v1477, 0
        %1486 = vmatprep.subr.mxu0 0.0
        %1487 = vmatpush1.xpose.msra.mxu0 %v1482
        %1488 = vmatprep.subr.mxu0 0.0
        %1489 = vmatpush1.xpose.msra.mxu0 %v1484
        %1490 = vmatprep.subr.mxu0 0.0
        %1491 = vmatpush1.xpose.msra.mxu0 0.0
        %1492 = vmatprep.subr.mxu0 0.0
        %1493 = vmatpush1.xpose.msra.mxu0 0.0
        %1494 = vmatprep.subr.mxu0 0.0
        %1495 = vmatpush1.xpose.msra.mxu0 0.0
        %1496 = vmatprep.subr.mxu0 0.0
        %1497 = vmatpush1.xpose.msra.mxu0 0.0
        %1498 = vmatprep.subr.mxu0 0.0
        %1499 = vmatpush1.xpose.msra.mxu0 0.0
        %1500 = vmatprep.subr.mxu0 0.0
        %1501 = vmatpush1.xpose.msra.mxu0 0.0
        %1502 = vmatprep.subr.mxu0 0.0
        %1503 = vmatpush1.xpose.msra.mxu0 0.0
        %1504 = vmatprep.subr.mxu0 0.0
        %1505 = vmatpush1.xpose.msra.mxu0 0.0
        %1506 = vmatprep.subr.mxu0 0.0
        %1507 = vmatpush1.xpose.msra.mxu0 0.0
        %1508 = vmatprep.subr.mxu0 0.0
        %1509 = vmatpush1.xpose.msra.mxu0 0.0
        %1510 = vmatprep.subr.mxu0 0.0
        %1511 = vmatpush1.xpose.msra.mxu0 0.0
        %1512 = vmatprep.subr.mxu0 0.0
        %1513 = vmatpush1.xpose.msra.mxu0 0.0
        %1514 = vmatprep.subr.mxu0 0.0
        %1515 = vmatpush1.xpose.msra.mxu0 0.0
        %1516 = vmatprep.subr.mxu0 0.0
        %1517 = vmatpush1.xpose.msra.mxu0 0.0
        %1518 = vmatprep.subr.mxu0 0.0
        %1519 = vmatpush1.xpose.msra.mxu0 0.0
        %1520 = vmatprep.subr.mxu0 0.0
        %1521 = vmatpush1.xpose.msra.mxu0 0.0
        %1522 = vmatprep.subr.mxu0 0.0
        %1523 = vmatpush1.xpose.msra.mxu0 0.0
        %1524 = vmatprep.subr.mxu0 0.0
        %1525 = vmatpush1.xpose.msra.mxu0 0.0
        %1526 = vmatprep.subr.mxu0 0.0
        %1527 = vmatpush1.xpose.msra.mxu0 0.0
        %1528 = vmatprep.subr.mxu0 0.0
        %1529 = vmatpush1.xpose.msra.mxu0 0.0
        %1530 = vmatprep.subr.mxu0 0.0
        %1531 = vmatpush1.xpose.msra.mxu0 0.0
        %1532 = vmatprep.subr.mxu0 0.0
        %1533 = vmatpush1.xpose.msra.mxu0 0.0
        %1534 = vmatprep.subr.mxu0 0.0
        %1535 = vmatpush1.xpose.msra.mxu0 0.0
        %1536 = vmatprep.subr.mxu0 0.0
        %1537 = vmatpush1.xpose.msra.mxu0 0.0
        %1538 = vmatprep.subr.mxu0 0.0
        %1539 = vmatpush1.xpose.msra.mxu0 0.0
        %1540 = vmatprep.subr.mxu0 0.0
        %1541 = vmatpush1.xpose.msra.mxu0 0.0
        %1542 = vmatprep.subr.mxu0 0.0
        %1543 = vmatpush1.xpose.msra.mxu0 0.0
        %1544 = vmatprep.subr.mxu0 0.0
        %1545 = vmatpush1.xpose.msra.mxu0 0.0
        %1546 = vmatprep.subr.mxu0 0.0
        %1547 = vmatpush1.xpose.msra.mxu0 0.0
        %1548 = vmatprep.subr.mxu0 0.0
        %1549 = vmatpush1.xpose.msra.mxu0 0.0
        %1550 = vmatprep.mubr.f32.mxu0 0.0
        %1551 = vmatmul.mubr.f32.gmra.mrb[0].mxu0 %v1478
        %v1552 = vpop.f32.mrb[0].mxu0
        %v1553 = vadd.f32 0.0, %v1552
        %v1554 = vpop.f32.mrb[0].mxu0
        %1555 = vmatprep.mubr.f32.mxu0 0.0
        %1556 = vmatmul.mubr.f32.gmra.mrb[0].mxu0 %v1480
        %v1557 = vpop.f32.mrb[0].mxu0
        %v1558 = vadd.f32 0.0, %v1557
        %v1559 = vpop.f32.mrb[0].mxu0
        %1560 = vdwg.mxu0
        %v1561 = vmul.f32 %v1553, 0.35355338
        %v1562 = vmul.f32 %v1558, 0.35355338
        %v1563 = vadd.f32 %v1561, %v898
        %v1564 = vadd.f32 %v1562, %v899
        %v1565 = vsel %vm994, %v1563, -inf
        %1566 = vmax.xlane.f32.xlu0 %v1565
        %v1567 = vpop.xlane.xlu0 %1566
        %v1568 = vsel %vm994, %v1564, -inf
        %1569 = vmax.xlane.f32.xlu0 %v1568
        %v1570 = vpop.xlane.xlu0 %1569
        %v1571 = vsub.f32 %v1563, %v1567
        %v1572 = vsub.f32 %v1564, %v1570
        %v1573 = vmul.f32 %v1571, 1.442695
        %v1574 = vpow.pop %v1573
        %v1575 = vmul.f32 %v1572, 1.442695
        %v1576 = vpow.pop %v1575
        %v1577 = vsel %vm994, %v1574, 0.0
        %1578 = vadd.xlane.f32.xlu0 %v1577
        %v1579 = vpop.xlane.xlu0 %1578
        %v1580 = vsel %vm994, %v1576, 0.0
        %1581 = vadd.xlane.f32.xlu0 %v1580
        %v1582 = vpop.xlane.xlu0 %1581
        %v1583 = vrcp.pop %v1579
        %v1584 = vrcp.pop %v1582
        %v1585 = vmul.f32 %v1574, %v1583
        %v1586 = vmul.f32 %v1576, %v1584
        %1587 = vrot.lane.b32.xlu0 %v886, 48
        %v1588 = vpop.permute.xlu0 %1587
        %1589 = vrot.lane.b32.xlu0 %v891, 48
        %v1590 = vpop.permute.xlu0 %1589
        %v1594 = vsel %vm994, %v1585, 0
        %v1597 = vsel %vm994, %v1586, 0
        %1599 = vmatprep.subr.mxu0 0.0
        %1600 = vmatpush1.msra.mxu0 %v1588
        %1601 = vmatprep.subr.mxu0 0.0
        %1602 = vmatpush1.msra.mxu0 %v1590
        %1603 = vmatprep.subr.mxu0 0.0
        %1604 = vmatpush1.msra.mxu0 0.0
        %1605 = vmatprep.subr.mxu0 0.0
        %1606 = vmatpush1.msra.mxu0 0.0
        %1607 = vmatprep.subr.mxu0 0.0
        %1608 = vmatpush1.msra.mxu0 0.0
        %1609 = vmatprep.subr.mxu0 0.0
        %1610 = vmatpush1.msra.mxu0 0.0
        %1611 = vmatprep.subr.mxu0 0.0
        %1612 = vmatpush1.msra.mxu0 0.0
        %1613 = vmatprep.subr.mxu0 0.0
        %1614 = vmatpush1.msra.mxu0 0.0
        %1615 = vmatprep.subr.mxu0 0.0
        %1616 = vmatpush1.msra.mxu0 0.0
        %1617 = vmatprep.subr.mxu0 0.0
        %1618 = vmatpush1.msra.mxu0 0.0
        %1619 = vmatprep.subr.mxu0 0.0
        %1620 = vmatpush1.msra.mxu0 0.0
        %1621 = vmatprep.subr.mxu0 0.0
        %1622 = vmatpush1.msra.mxu0 0.0
        %1623 = vmatprep.subr.mxu0 0.0
        %1624 = vmatpush1.msra.mxu0 0.0
        %1625 = vmatprep.subr.mxu0 0.0
        %1626 = vmatpush1.msra.mxu0 0.0
        %1627 = vmatprep.subr.mxu0 0.0
        %1628 = vmatpush1.msra.mxu0 0.0
        %1629 = vmatprep.subr.mxu0 0.0
        %1630 = vmatpush1.msra.mxu0 0.0
        %1631 = vmatprep.subr.mxu0 0.0
        %1632 = vmatpush1.msra.mxu0 0.0
        %1633 = vmatprep.subr.mxu0 0.0
        %1634 = vmatpush1.msra.mxu0 0.0
        %1635 = vmatprep.subr.mxu0 0.0
        %1636 = vmatpush1.msra.mxu0 0.0
        %1637 = vmatprep.subr.mxu0 0.0
        %1638 = vmatpush1.msra.mxu0 0.0
        %1639 = vmatprep.subr.mxu0 0.0
        %1640 = vmatpush1.msra.mxu0 0.0
        %1641 = vmatprep.subr.mxu0 0.0
        %1642 = vmatpush1.msra.mxu0 0.0
        %1643 = vmatprep.subr.mxu0 0.0
        %1644 = vmatpush1.msra.mxu0 0.0
        %1645 = vmatprep.subr.mxu0 0.0
        %1646 = vmatpush1.msra.mxu0 0.0
        %1647 = vmatprep.subr.mxu0 0.0
        %1648 = vmatpush1.msra.mxu0 0.0
        %1649 = vmatprep.subr.mxu0 0.0
        %1650 = vmatpush1.msra.mxu0 0.0
        %1651 = vmatprep.subr.mxu0 0.0
        %1652 = vmatpush1.msra.mxu0 0.0
        %1653 = vmatprep.subr.mxu0 0.0
        %1654 = vmatpush1.msra.mxu0 0.0
        %1655 = vmatprep.subr.mxu0 0.0
        %1656 = vmatpush1.msra.mxu0 0.0
        %1657 = vmatprep.subr.mxu0 0.0
        %1658 = vmatpush1.msra.mxu0 0.0
        %1659 = vmatprep.subr.mxu0 0.0
        %1660 = vmatpush1.msra.mxu0 0.0
        %1661 = vmatprep.subr.mxu0 0.0
        %1662 = vmatpush1.msra.mxu0 0.0
        %1663 = vmatprep.mubr.f32.mxu0 0.0
        %1664 = vmatmul.mubr.f32.gmra.mrb[0].mxu0 %v1594
        %v1665 = vpop.f32.mrb[0].mxu0
        %v1666 = vadd.f32 0.0, %v1665
        %v1667 = vpop.f32.mrb[0].mxu0
        %1668 = vmatprep.mubr.f32.mxu0 0.0
        %1669 = vmatmul.mubr.f32.gmra.mrb[0].mxu0 %v1597
        %v1670 = vpop.f32.mrb[0].mxu0
        %v1671 = vadd.f32 0.0, %v1670
        %v1672 = vpop.f32.mrb[0].mxu0
        %1673 = vdwg.mxu0
        %v1675 = vsel %vm906, %v1666, 0
        %v1678 = vsel %vm906, %v1671, 0
        %1680 = vmatprep.subr.mxu0 0.0
        %1681 = vmatpush1.msra.mxu0 %v896
        %1682 = vmatprep.subr.mxu0 0.0
        %1683 = vmatpush1.msra.mxu0 0.0
        %1684 = vmatprep.subr.mxu0 0.0
        %1685 = vmatpush1.msra.mxu0 0.0
        %1686 = vmatprep.subr.mxu0 0.0
        %1687 = vmatpush1.msra.mxu0 0.0
        %1688 = vmatprep.subr.mxu0 0.0
        %1689 = vmatpush1.msra.mxu0 0.0
        %1690 = vmatprep.subr.mxu0 0.0
        %1691 = vmatpush1.msra.mxu0 0.0
        %1692 = vmatprep.subr.mxu0 0.0
        %1693 = vmatpush1.msra.mxu0 0.0
        %1694 = vmatprep.subr.mxu0 0.0
        %1695 = vmatpush1.msra.mxu0 0.0
        %1696 = vmatprep.subr.mxu0 0.0
        %1697 = vmatpush1.msra.mxu0 0.0
        %1698 = vmatprep.subr.mxu0 0.0
        %1699 = vmatpush1.msra.mxu0 0.0
        %1700 = vmatprep.subr.mxu0 0.0
        %1701 = vmatpush1.msra.mxu0 0.0
        %1702 = vmatprep.subr.mxu0 0.0
        %1703 = vmatpush1.msra.mxu0 0.0
        %1704 = vmatprep.subr.mxu0 0.0
        %1705 = vmatpush1.msra.mxu0 0.0
        %1706 = vmatprep.subr.mxu0 0.0
        %1707 = vmatpush1.msra.mxu0 0.0
        %1708 = vmatprep.subr.mxu0 0.0
        %1709 = vmatpush1.msra.mxu0 0.0
        %1710 = vmatprep.subr.mxu0 0.0
        %1711 = vmatpush1.msra.mxu0 0.0
        %1712 = vmatprep.subr.mxu0 0.0
        %1713 = vmatpush1.msra.mxu0 0.0
        %1714 = vmatprep.subr.mxu0 0.0
        %1715 = vmatpush1.msra.mxu0 0.0
        %1716 = vmatprep.subr.mxu0 0.0
        %1717 = vmatpush1.msra.mxu0 0.0
        %1718 = vmatprep.subr.mxu0 0.0
        %1719 = vmatpush1.msra.mxu0 0.0
        %1720 = vmatprep.subr.mxu0 0.0
        %1721 = vmatpush1.msra.mxu0 0.0
        %1722 = vmatprep.subr.mxu0 0.0
        %1723 = vmatpush1.msra.mxu0 0.0
        %1724 = vmatprep.subr.mxu0 0.0
        %1725 = vmatpush1.msra.mxu0 0.0
        %1726 = vmatprep.subr.mxu0 0.0
        %1727 = vmatpush1.msra.mxu0 0.0
        %1728 = vmatprep.subr.mxu0 0.0
        %1729 = vmatpush1.msra.mxu0 0.0
        %1730 = vmatprep.subr.mxu0 0.0
        %1731 = vmatpush1.msra.mxu0 0.0
        %1732 = vmatprep.subr.mxu0 0.0
        %1733 = vmatpush1.msra.mxu0 0.0
        %1734 = vmatprep.subr.mxu0 0.0
        %1735 = vmatpush1.msra.mxu0 0.0
        %1736 = vmatprep.subr.mxu0 0.0
        %1737 = vmatpush1.msra.mxu0 0.0
        %1738 = vmatprep.subr.mxu0 0.0
        %1739 = vmatpush1.msra.mxu0 0.0
        %1740 = vmatprep.subr.mxu0 0.0
        %1741 = vmatpush1.msra.mxu0 0.0
        %1742 = vmatprep.subr.mxu0 0.0
        %1743 = vmatpush1.msra.mxu0 0.0
        %1744 = vmatprep.mubr.f32.mxu0 0.0
        %1745 = vmatmul.mubr.f32.gmra.mrb[0].mxu0 %v1675
        %v1746 = vpop.f32.mrb[0].mxu0
        %v1747 = vadd.f32 0.0, %v1746
        %v1748 = vpop.f32.mrb[0].mxu0
        %1749 = vmatprep.mubr.f32.mxu0 0.0
        %1750 = vmatmul.mubr.f32.gmra.mrb[0].mxu0 %v1678
        %v1751 = vpop.f32.mrb[0].mxu0
        %v1752 = vadd.f32 0.0, %v1751
        %v1753 = vpop.f32.mrb[0].mxu0
        %1754 = vdwg.mxu0
        %v1755 = vadd.f32 %v1462, %v1747
        %v1756 = vadd.f32 %v1467, %v1752
        %1757 = vrot.lane.b32.xlu0 %v886, 104
        %v1758 = vpop.permute.xlu0 %1757
        %1759 = vrot.lane.b32.xlu0 %v891, 104
        %v1760 = vpop.permute.xlu0 %1759
        %1761 = vrot.lane.b32.xlu0 %v886, 72
        %v1762 = vpop.permute.xlu0 %1761
        %1763 = vrot.lane.b32.xlu0 %v891, 72
        %v1764 = vpop.permute.xlu0 %1763
        %v1765 = vsel %vm906, %v1758, 0
        %v1767 = vsel %vm906, %v1760, 0
        %v1769 = vsel %vm906, %v1762, 0
        %v1771 = vsel %vm906, %v1764, 0
        %1773 = vmatprep.subr.mxu0 0.0
        %1774 = vmatpush1.xpose.msra.mxu0 %v1769
        %1775 = vmatprep.subr.mxu0 0.0
        %1776 = vmatpush1.xpose.msra.mxu0 %v1771
        %1777 = vmatprep.subr.mxu0 0.0
        %1778 = vmatpush1.xpose.msra.mxu0 0.0
        %1779 = vmatprep.subr.mxu0 0.0
        %1780 = vmatpush1.xpose.msra.mxu0 0.0
        %1781 = vmatprep.subr.mxu0 0.0
        %1782 = vmatpush1.xpose.msra.mxu0 0.0
        %1783 = vmatprep.subr.mxu0 0.0
        %1784 = vmatpush1.xpose.msra.mxu0 0.0
        %1785 = vmatprep.subr.mxu0 0.0
        %1786 = vmatpush1.xpose.msra.mxu0 0.0
        %1787 = vmatprep.subr.mxu0 0.0
        %1788 = vmatpush1.xpose.msra.mxu0 0.0
        %1789 = vmatprep.subr.mxu0 0.0
        %1790 = vmatpush1.xpose.msra.mxu0 0.0
        %1791 = vmatprep.subr.mxu0 0.0
        %1792 = vmatpush1.xpose.msra.mxu0 0.0
        %1793 = vmatprep.subr.mxu0 0.0
        %1794 = vmatpush1.xpose.msra.mxu0 0.0
        %1795 = vmatprep.subr.mxu0 0.0
        %1796 = vmatpush1.xpose.msra.mxu0 0.0
        %1797 = vmatprep.subr.mxu0 0.0
        %1798 = vmatpush1.xpose.msra.mxu0 0.0
        %1799 = vmatprep.subr.mxu0 0.0
        %1800 = vmatpush1.xpose.msra.mxu0 0.0
        %1801 = vmatprep.subr.mxu0 0.0
        %1802 = vmatpush1.xpose.msra.mxu0 0.0
        %1803 = vmatprep.subr.mxu0 0.0
        %1804 = vmatpush1.xpose.msra.mxu0 0.0
        %1805 = vmatprep.subr.mxu0 0.0
        %1806 = vmatpush1.xpose.msra.mxu0 0.0
        %1807 = vmatprep.subr.mxu0 0.0
        %1808 = vmatpush1.xpose.msra.mxu0 0.0
        %1809 = vmatprep.subr.mxu0 0.0
        %1810 = vmatpush1.xpose.msra.mxu0 0.0
        %1811 = vmatprep.subr.mxu0 0.0
        %1812 = vmatpush1.xpose.msra.mxu0 0.0
        %1813 = vmatprep.subr.mxu0 0.0
        %1814 = vmatpush1.xpose.msra.mxu0 0.0
        %1815 = vmatprep.subr.mxu0 0.0
        %1816 = vmatpush1.xpose.msra.mxu0 0.0
        %1817 = vmatprep.subr.mxu0 0.0
        %1818 = vmatpush1.xpose.msra.mxu0 0.0
        %1819 = vmatprep.subr.mxu0 0.0
        %1820 = vmatpush1.xpose.msra.mxu0 0.0
        %1821 = vmatprep.subr.mxu0 0.0
        %1822 = vmatpush1.xpose.msra.mxu0 0.0
        %1823 = vmatprep.subr.mxu0 0.0
        %1824 = vmatpush1.xpose.msra.mxu0 0.0
        %1825 = vmatprep.subr.mxu0 0.0
        %1826 = vmatpush1.xpose.msra.mxu0 0.0
        %1827 = vmatprep.subr.mxu0 0.0
        %1828 = vmatpush1.xpose.msra.mxu0 0.0
        %1829 = vmatprep.subr.mxu0 0.0
        %1830 = vmatpush1.xpose.msra.mxu0 0.0
        %1831 = vmatprep.subr.mxu0 0.0
        %1832 = vmatpush1.xpose.msra.mxu0 0.0
        %1833 = vmatprep.subr.mxu0 0.0
        %1834 = vmatpush1.xpose.msra.mxu0 0.0
        %1835 = vmatprep.subr.mxu0 0.0
        %1836 = vmatpush1.xpose.msra.mxu0 0.0
        %1837 = vmatprep.mubr.f32.mxu0 0.0
        %1838 = vmatmul.mubr.f32.gmra.mrb[0].mxu0 %v1765
        %v1839 = vpop.f32.mrb[0].mxu0
        %v1840 = vadd.f32 0.0, %v1839
        %v1841 = vpop.f32.mrb[0].mxu0
        %1842 = vmatprep.mubr.f32.mxu0 0.0
        %1843 = vmatmul.mubr.f32.gmra.mrb[0].mxu0 %v1767
        %v1844 = vpop.f32.mrb[0].mxu0
        %v1845 = vadd.f32 0.0, %v1844
        %v1846 = vpop.f32.mrb[0].mxu0
        %1847 = vdwg.mxu0
        %v1848 = vmul.f32 %v1840, 0.35355338
        %v1849 = vmul.f32 %v1845, 0.35355338
        %v1850 = vadd.f32 %v1848, %v898
        %v1851 = vadd.f32 %v1849, %v899
        %v1852 = vsel %vm994, %v1850, -inf
        %1853 = vmax.xlane.f32.xlu0 %v1852
        %v1854 = vpop.xlane.xlu0 %1853
        %v1855 = vsel %vm994, %v1851, -inf
        %1856 = vmax.xlane.f32.xlu0 %v1855
        %v1857 = vpop.xlane.xlu0 %1856
        %v1858 = vsub.f32 %v1850, %v1854
        %v1859 = vsub.f32 %v1851, %v1857
        %v1860 = vmul.f32 %v1858, 1.442695
        %v1861 = vpow.pop %v1860
        %v1862 = vmul.f32 %v1859, 1.442695
        %v1863 = vpow.pop %v1862
        %v1864 = vsel %vm994, %v1861, 0.0
        %1865 = vadd.xlane.f32.xlu0 %v1864
        %v1866 = vpop.xlane.xlu0 %1865
        %v1867 = vsel %vm994, %v1863, 0.0
        %1868 = vadd.xlane.f32.xlu0 %v1867
        %v1869 = vpop.xlane.xlu0 %1868
        %v1870 = vrcp.pop %v1866
        %v1871 = vrcp.pop %v1869
        %v1872 = vmul.f32 %v1861, %v1870
        %v1873 = vmul.f32 %v1863, %v1871
        %1874 = vrot.lane.b32.xlu0 %v886, 40
        %v1875 = vpop.permute.xlu0 %1874
        %1876 = vrot.lane.b32.xlu0 %v891, 40
        %v1877 = vpop.permute.xlu0 %1876
        %v1881 = vsel %vm994, %v1872, 0
        %v1884 = vsel %vm994, %v1873, 0
        %1886 = vmatprep.subr.mxu0 0.0
        %1887 = vmatpush1.msra.mxu0 %v1875
        %1888 = vmatprep.subr.mxu0 0.0
        %1889 = vmatpush1.msra.mxu0 %v1877
        %1890 = vmatprep.subr.mxu0 0.0
        %1891 = vmatpush1.msra.mxu0 0.0
        %1892 = vmatprep.subr.mxu0 0.0
        %1893 = vmatpush1.msra.mxu0 0.0
        %1894 = vmatprep.subr.mxu0 0.0
        %1895 = vmatpush1.msra.mxu0 0.0
        %1896 = vmatprep.subr.mxu0 0.0
        %1897 = vmatpush1.msra.mxu0 0.0
        %1898 = vmatprep.subr.mxu0 0.0
        %1899 = vmatpush1.msra.mxu0 0.0
        %1900 = vmatprep.subr.mxu0 0.0
        %1901 = vmatpush1.msra.mxu0 0.0
        %1902 = vmatprep.subr.mxu0 0.0
        %1903 = vmatpush1.msra.mxu0 0.0
        %1904 = vmatprep.subr.mxu0 0.0
        %1905 = vmatpush1.msra.mxu0 0.0
        %1906 = vmatprep.subr.mxu0 0.0
        %1907 = vmatpush1.msra.mxu0 0.0
        %1908 = vmatprep.subr.mxu0 0.0
        %1909 = vmatpush1.msra.mxu0 0.0
        %1910 = vmatprep.subr.mxu0 0.0
        %1911 = vmatpush1.msra.mxu0 0.0
        %1912 = vmatprep.subr.mxu0 0.0
        %1913 = vmatpush1.msra.mxu0 0.0
        %1914 = vmatprep.subr.mxu0 0.0
        %1915 = vmatpush1.msra.mxu0 0.0
        %1916 = vmatprep.subr.mxu0 0.0
        %1917 = vmatpush1.msra.mxu0 0.0
        %1918 = vmatprep.subr.mxu0 0.0
        %1919 = vmatpush1.msra.mxu0 0.0
        %1920 = vmatprep.subr.mxu0 0.0
        %1921 = vmatpush1.msra.mxu0 0.0
        %1922 = vmatprep.subr.mxu0 0.0
        %1923 = vmatpush1.msra.mxu0 0.0
        %1924 = vmatprep.subr.mxu0 0.0
        %1925 = vmatpush1.msra.mxu0 0.0
        %1926 = vmatprep.subr.mxu0 0.0
        %1927 = vmatpush1.msra.mxu0 0.0
        %1928 = vmatprep.subr.mxu0 0.0
        %1929 = vmatpush1.msra.mxu0 0.0
        %1930 = vmatprep.subr.mxu0 0.0
        %1931 = vmatpush1.msra.mxu0 0.0
        %1932 = vmatprep.subr.mxu0 0.0
        %1933 = vmatpush1.msra.mxu0 0.0
        %1934 = vmatprep.subr.mxu0 0.0
        %1935 = vmatpush1.msra.mxu0 0.0
        %1936 = vmatprep.subr.mxu0 0.0
        %1937 = vmatpush1.msra.mxu0 0.0
        %1938 = vmatprep.subr.mxu0 0.0
        %1939 = vmatpush1.msra.mxu0 0.0
        %1940 = vmatprep.subr.mxu0 0.0
        %1941 = vmatpush1.msra.mxu0 0.0
        %1942 = vmatprep.subr.mxu0 0.0
        %1943 = vmatpush1.msra.mxu0 0.0
        %1944 = vmatprep.subr.mxu0 0.0
        %1945 = vmatpush1.msra.mxu0 0.0
        %1946 = vmatprep.subr.mxu0 0.0
        %1947 = vmatpush1.msra.mxu0 0.0
        %1948 = vmatprep.subr.mxu0 0.0
        %1949 = vmatpush1.msra.mxu0 0.0
        %1950 = vmatprep.mubr.f32.mxu0 0.0
        %1951 = vmatmul.mubr.f32.gmra.mrb[0].mxu0 %v1881
        %v1952 = vpop.f32.mrb[0].mxu0
        %v1953 = vadd.f32 0.0, %v1952
        %v1954 = vpop.f32.mrb[0].mxu0
        %1955 = vmatprep.mubr.f32.mxu0 0.0
        %1956 = vmatmul.mubr.f32.gmra.mrb[0].mxu0 %v1884
        %v1957 = vpop.f32.mrb[0].mxu0
        %v1958 = vadd.f32 0.0, %v1957
        %v1959 = vpop.f32.mrb[0].mxu0
        %1960 = vdwg.mxu0
        %v1962 = vsel %vm906, %v1953, 0
        %v1965 = vsel %vm906, %v1958, 0
        %1967 = vmatprep.subr.mxu0 0.0
        %1968 = vmatpush1.msra.mxu0 %v897
        %1969 = vmatprep.subr.mxu0 0.0
        %1970 = vmatpush1.msra.mxu0 0.0
        %1971 = vmatprep.subr.mxu0 0.0
        %1972 = vmatpush1.msra.mxu0 0.0
        %1973 = vmatprep.subr.mxu0 0.0
        %1974 = vmatpush1.msra.mxu0 0.0
        %1975 = vmatprep.subr.mxu0 0.0
        %1976 = vmatpush1.msra.mxu0 0.0
        %1977 = vmatprep.subr.mxu0 0.0
        %1978 = vmatpush1.msra.mxu0 0.0
        %1979 = vmatprep.subr.mxu0 0.0
        %1980 = vmatpush1.msra.mxu0 0.0
        %1981 = vmatprep.subr.mxu0 0.0
        %1982 = vmatpush1.msra.mxu0 0.0
        %1983 = vmatprep.subr.mxu0 0.0
        %1984 = vmatpush1.msra.mxu0 0.0
        %1985 = vmatprep.subr.mxu0 0.0
        %1986 = vmatpush1.msra.mxu0 0.0
        %1987 = vmatprep.subr.mxu0 0.0
        %1988 = vmatpush1.msra.mxu0 0.0
        %1989 = vmatprep.subr.mxu0 0.0
        %1990 = vmatpush1.msra.mxu0 0.0
        %1991 = vmatprep.subr.mxu0 0.0
        %1992 = vmatpush1.msra.mxu0 0.0
        %1993 = vmatprep.subr.mxu0 0.0
        %1994 = vmatpush1.msra.mxu0 0.0
        %1995 = vmatprep.subr.mxu0 0.0
        %1996 = vmatpush1.msra.mxu0 0.0
        %1997 = vmatprep.subr.mxu0 0.0
        %1998 = vmatpush1.msra.mxu0 0.0
        %1999 = vmatprep.subr.mxu0 0.0
        %2000 = vmatpush1.msra.mxu0 0.0
        %2001 = vmatprep.subr.mxu0 0.0
        %2002 = vmatpush1.msra.mxu0 0.0
        %2003 = vmatprep.subr.mxu0 0.0
        %2004 = vmatpush1.msra.mxu0 0.0
        %2005 = vmatprep.subr.mxu0 0.0
        %2006 = vmatpush1.msra.mxu0 0.0
        %2007 = vmatprep.subr.mxu0 0.0
        %2008 = vmatpush1.msra.mxu0 0.0
        %2009 = vmatprep.subr.mxu0 0.0
        %2010 = vmatpush1.msra.mxu0 0.0
        %2011 = vmatprep.subr.mxu0 0.0
        %2012 = vmatpush1.msra.mxu0 0.0
        %2013 = vmatprep.subr.mxu0 0.0
        %2014 = vmatpush1.msra.mxu0 0.0
        %2015 = vmatprep.subr.mxu0 0.0
        %2016 = vmatpush1.msra.mxu0 0.0
        %2017 = vmatprep.subr.mxu0 0.0
        %2018 = vmatpush1.msra.mxu0 0.0
        %2019 = vmatprep.subr.mxu0 0.0
        %2020 = vmatpush1.msra.mxu0 0.0
        %2021 = vmatprep.subr.mxu0 0.0
        %2022 = vmatpush1.msra.mxu0 0.0
        %2023 = vmatprep.subr.mxu0 0.0
        %2024 = vmatpush1.msra.mxu0 0.0
        %2025 = vmatprep.subr.mxu0 0.0
        %2026 = vmatpush1.msra.mxu0 0.0
        %2027 = vmatprep.subr.mxu0 0.0
        %2028 = vmatpush1.msra.mxu0 0.0
        %2029 = vmatprep.subr.mxu0 0.0
        %2030 = vmatpush1.msra.mxu0 0.0
        %2031 = vmatprep.mubr.f32.mxu0 0.0
        %2032 = vmatmul.mubr.f32.gmra.mrb[0].mxu0 %v1962
        %v2033 = vpop.f32.mrb[0].mxu0
        %v2034 = vadd.f32 0.0, %v2033
        %v2035 = vpop.f32.mrb[0].mxu0
        %2036 = vmatprep.mubr.f32.mxu0 0.0
        %2037 = vmatmul.mubr.f32.gmra.mrb[0].mxu0 %v1965
        %v2038 = vpop.f32.mrb[0].mxu0
        %v2039 = vadd.f32 0.0, %v2038
        %v2040 = vpop.f32.mrb[0].mxu0
        %2041 = vdwg.mxu0
        %v2042 = vadd.f32 %v1755, %v2034
        %v2043 = vadd.f32 %v1756, %v2039
        %v2044 = vadd.f32 %v754, %v2042
        %v2045 = vadd.f32 %v755, %v2043
        %v2046 = vld [vmem:[%s718] sm:$0x1]
        %v2048 = vlaneseq
        %v2049 = vshrl.u32 %v2048, 7
        %v2050 = vsub.s32 0, %v2049
        %v2051 = vrot.slane %v2046, %v2050
        %v2053 = vadd.f32 %v2044, %v2051
        %v2054 = vadd.f32 %v2045, %v2051
        %v2055 = vld [vmem:[%s721] sm:$0x1]
        %v2056 = vld [vmem:[%s724] sm:$0x1]
        %v2057 = vsel %vm758, %v2053, 0.0
        %2058 = vadd.xlane.f32.xlu0 %v2057
        %v2059 = vpop.xlane.xlu0 %2058
        %v2060 = vsel %vm758, %v2054, 0.0
        %2061 = vadd.xlane.f32.xlu0 %v2060
        %v2062 = vpop.xlane.xlu0 %2061
        %v2063 = vmul.f32 %v2059, %v765
        %v2064 = vmul.f32 %v2062, %v765
        %v2065 = vsub.f32 %v2053, %v2063
        %v2066 = vsub.f32 %v2054, %v2064
        %v2067 = vmul.f32 %v2065, %v2065
        %v2068 = vmul.f32 %v2066, %v2066
        %v2069 = vsel %vm758, %v2067, 0.0
        %2070 = vadd.xlane.f32.xlu0 %v2069
        %v2071 = vpop.xlane.xlu0 %2070
        %v2072 = vsel %vm758, %v2068, 0.0
        %2073 = vadd.xlane.f32.xlu0 %v2072
        %v2074 = vpop.xlane.xlu0 %2073
        %v2075 = vmul.f32 %v2071, %v765
        %v2076 = vmul.f32 %v2074, %v765
        %v2077 = vadd.f32 %v2075, 1e-05
        %v2078 = vadd.f32 %v2076, 1e-05
        %v2079 = vrsqrt.pop %v2077
        %v2080 = vrsqrt.pop %v2078
        %v2081 = vmul.f32 %v2065, %v2079
        %v2082 = vmul.f32 %v2066, %v2080
        %v2084 = vlaneseq
        %v2085 = vshrl.u32 %v2084, 7
        %v2086 = vsub.s32 0, %v2085
        %v2087 = vrot.slane %v2055, %v2086
        %v2089 = vmul.f32 %v2081, %v2087
        %v2090 = vmul.f32 %v2082, %v2087
        %v2092 = vlaneseq
        %v2093 = vshrl.u32 %v2092, 7
        %v2094 = vsub.s32 0, %v2093
        %v2095 = vrot.slane %v2056, %v2094
        %v2097 = vadd.f32 %v2089, %v2095
        %v2098 = vadd.f32 %v2090, %v2095
        %v2099 = vld [vmem:[%s729] sm:$0xff]
        %v2100 = vld [vmem:[%s729 + $0x8] sm:$0xff]
        %v2101 = vld [vmem:[%s729 + $0x10] sm:$0xff]
        %v2102 = vld [vmem:[%s729 + $0x18] sm:$0xff]
        %v2103 = vld [vmem:[%s732] sm:$0x1]
        %v2105 = vlaneseq
        %v2106 = vshrl.u32 %v2105, 7
        %v2107 = vsub.s32 0, %v2106
        %v2108 = vrot.slane %v2103, %v2107
        %v2111 = vsel %vm758, %v2097, 0
        %v2114 = vsel %vm758, %v2098, 0
        %2116 = vmatprep.subr.mxu0 0.0
        %2117 = vmatpush1.msra.mxu0 %v2099
        %2118 = vmatprep.subr.mxu0 0.0
        %2119 = vmatpush1.msra.mxu0 %v2100
        %2120 = vmatprep.subr.mxu0 0.0
        %2121 = vmatpush1.msra.mxu0 %v2101
        %2122 = vmatprep.subr.mxu0 0.0
        %2123 = vmatpush1.msra.mxu0 %v2102
        %2124 = vmatprep.subr.mxu0 0.0
        %2125 = vmatpush1.msra.mxu0 0.0
        %2126 = vmatprep.subr.mxu0 0.0
        %2127 = vmatpush1.msra.mxu0 0.0
        %2128 = vmatprep.subr.mxu0 0.0
        %2129 = vmatpush1.msra.mxu0 0.0
        %2130 = vmatprep.subr.mxu0 0.0
        %2131 = vmatpush1.msra.mxu0 0.0
        %2132 = vmatprep.subr.mxu0 0.0
        %2133 = vmatpush1.msra.mxu0 0.0
        %2134 = vmatprep.subr.mxu0 0.0
        %2135 = vmatpush1.msra.mxu0 0.0
        %2136 = vmatprep.subr.mxu0 0.0
        %2137 = vmatpush1.msra.mxu0 0.0
        %2138 = vmatprep.subr.mxu0 0.0
        %2139 = vmatpush1.msra.mxu0 0.0
        %2140 = vmatprep.subr.mxu0 0.0
        %2141 = vmatpush1.msra.mxu0 0.0
        %2142 = vmatprep.subr.mxu0 0.0
        %2143 = vmatpush1.msra.mxu0 0.0
        %2144 = vmatprep.subr.mxu0 0.0
        %2145 = vmatpush1.msra.mxu0 0.0
        %2146 = vmatprep.subr.mxu0 0.0
        %2147 = vmatpush1.msra.mxu0 0.0
        %2148 = vmatprep.subr.mxu0 0.0
        %2149 = vmatpush1.msra.mxu0 0.0
        %2150 = vmatprep.subr.mxu0 0.0
        %2151 = vmatpush1.msra.mxu0 0.0
        %2152 = vmatprep.subr.mxu0 0.0
        %2153 = vmatpush1.msra.mxu0 0.0
        %2154 = vmatprep.subr.mxu0 0.0
        %2155 = vmatpush1.msra.mxu0 0.0
        %2156 = vmatprep.subr.mxu0 0.0
        %2157 = vmatpush1.msra.mxu0 0.0
        %2158 = vmatprep.subr.mxu0 0.0
        %2159 = vmatpush1.msra.mxu0 0.0
        %2160 = vmatprep.subr.mxu0 0.0
        %2161 = vmatpush1.msra.mxu0 0.0
        %2162 = vmatprep.subr.mxu0 0.0
        %2163 = vmatpush1.msra.mxu0 0.0
        %2164 = vmatprep.subr.mxu0 0.0
        %2165 = vmatpush1.msra.mxu0 0.0
        %2166 = vmatprep.subr.mxu0 0.0
        %2167 = vmatpush1.msra.mxu0 0.0
        %2168 = vmatprep.subr.mxu0 0.0
        %2169 = vmatpush1.msra.mxu0 0.0
        %2170 = vmatprep.subr.mxu0 0.0
        %2171 = vmatpush1.msra.mxu0 0.0
        %2172 = vmatprep.subr.mxu0 0.0
        %2173 = vmatpush1.msra.mxu0 0.0
        %2174 = vmatprep.subr.mxu0 0.0
        %2175 = vmatpush1.msra.mxu0 0.0
        %2176 = vmatprep.subr.mxu0 0.0
        %2177 = vmatpush1.msra.mxu0 0.0
        %2178 = vmatprep.subr.mxu0 0.0
        %2179 = vmatpush1.msra.mxu0 0.0
        %2180 = vmatprep.mubr.f32.mxu0 0.0
        %2181 = vmatmul.mubr.f32.gmra.mrb[0].mxu0 %v2111
        %v2182 = vpop.f32.mrb[0].mxu0
        %v2183 = vadd.f32 %v2108, %v2182
        %v2184 = vpop.f32.mrb[0].mxu0
        %2185 = vmatprep.mubr.f32.mxu0 0.0
        %2186 = vmatmul.mubr.f32.gmra.mrb[0].mxu0 %v2114
        %v2187 = vpop.f32.mrb[0].mxu0
        %v2188 = vadd.f32 %v2108, %v2187
        %v2189 = vpop.f32.mrb[0].mxu0
        %2190 = vdwg.mxu0
        %v2191 = vmul.f32 %v2183, 1.702
        %v2192 = vmul.f32 %v2188, 1.702
        %v2193 = vxor.u32 %v2191, 2147483648
        %v2194 = vxor.u32 %v2192, 2147483648
        %v2195 = vmul.f32 %v2193, 1.442695
        %v2196 = vpow.pop %v2195
        %v2197 = vmul.f32 %v2194, 1.442695
        %v2198 = vpow.pop %v2197
        %v2199 = vadd.f32 %v2196, 1.0
        %v2200 = vadd.f32 %v2198, 1.0
        %v2201 = vrcp.pop %v2199
        %v2202 = vmul.f32 1.0, %v2201
        %v2203 = vrcp.pop %v2200
        %v2204 = vmul.f32 1.0, %v2203
        %v2205 = vmul.f32 %v2183, %v2202
        %v2206 = vmul.f32 %v2188, %v2204
        %v2207 = vld [vmem:[%s737] sm:$0xff]
        %v2208 = vld [vmem:[%s737 + $0x8] sm:$0xff]
        %v2209 = vld [vmem:[%s737 + $0x10] sm:$0xff]
        %v2210 = vld [vmem:[%s737 + $0x18] sm:$0xff]
        %v2211 = vld [vmem:[%s737 + $0x20] sm:$0xff]
        %v2212 = vld [vmem:[%s737 + $0x28] sm:$0xff]
        %v2213 = vld [vmem:[%s737 + $0x30] sm:$0xff]
        %v2214 = vld [vmem:[%s737 + $0x38] sm:$0xff]
        %v2215 = vld [vmem:[%s737 + $0x40] sm:$0xff]
        %v2216 = vld [vmem:[%s737 + $0x48] sm:$0xff]
        %v2217 = vld [vmem:[%s737 + $0x50] sm:$0xff]
        %v2218 = vld [vmem:[%s737 + $0x58] sm:$0xff]
        %v2219 = vld [vmem:[%s737 + $0x60] sm:$0xff]
        %v2220 = vld [vmem:[%s737 + $0x68] sm:$0xff]
        %v2221 = vld [vmem:[%s737 + $0x70] sm:$0xff]
        %v2222 = vld [vmem:[%s737 + $0x78] sm:$0xff]
        %v2223 = vld [vmem:[%s740] sm:$0x1]
        %v2225 = vlaneseq
        %v2226 = vshrl.u32 %v2225, 7
        %v2227 = vsub.s32 0, %v2226
        %v2228 = vrot.slane %v2223, %v2227
        %2230 = vmatprep.subr.mxu0 0.0
        %2231 = vmatpush1.msra.mxu0 %v2207
        %2232 = vmatprep.subr.mxu0 0.0
        %2233 = vmatpush1.msra.mxu0 %v2208
        %2234 = vmatprep.subr.mxu0 0.0
        %2235 = vmatpush1.msra.mxu0 %v2209
        %2236 = vmatprep.subr.mxu0 0.0
        %2237 = vmatpush1.msra.mxu0 %v2210
        %2238 = vmatprep.subr.mxu0 0.0
        %2239 = vmatpush1.msra.mxu0 %v2211
        %2240 = vmatprep.subr.mxu0 0.0
        %2241 = vmatpush1.msra.mxu0 %v2212
        %2242 = vmatprep.subr.mxu0 0.0
        %2243 = vmatpush1.msra.mxu0 %v2213
        %2244 = vmatprep.subr.mxu0 0.0
        %2245 = vmatpush1.msra.mxu0 %v2214
        %2246 = vmatprep.subr.mxu0 0.0
        %2247 = vmatpush1.msra.mxu0 %v2215
        %2248 = vmatprep.subr.mxu0 0.0
        %2249 = vmatpush1.msra.mxu0 %v2216
        %2250 = vmatprep.subr.mxu0 0.0
        %2251 = vmatpush1.msra.mxu0 %v2217
        %2252 = vmatprep.subr.mxu0 0.0
        %2253 = vmatpush1.msra.mxu0 %v2218
        %2254 = vmatprep.subr.mxu0 0.0
        %2255 = vmatpush1.msra.mxu0 %v2219
        %2256 = vmatprep.subr.mxu0 0.0
        %2257 = vmatpush1.msra.mxu0 %v2220
        %2258 = vmatprep.subr.mxu0 0.0
        %2259 = vmatpush1.msra.mxu0 %v2221
        %2260 = vmatprep.subr.mxu0 0.0
        %2261 = vmatpush1.msra.mxu0 %v2222
        %2262 = vmatprep.subr.mxu0 0.0
        %2263 = vmatpush1.msra.mxu0 0.0
        %2264 = vmatprep.subr.mxu0 0.0
        %2265 = vmatpush1.msra.mxu0 0.0
        %2266 = vmatprep.subr.mxu0 0.0
        %2267 = vmatpush1.msra.mxu0 0.0
        %2268 = vmatprep.subr.mxu0 0.0
        %2269 = vmatpush1.msra.mxu0 0.0
        %2270 = vmatprep.subr.mxu0 0.0
        %2271 = vmatpush1.msra.mxu0 0.0
        %2272 = vmatprep.subr.mxu0 0.0
        %2273 = vmatpush1.msra.mxu0 0.0
        %2274 = vmatprep.subr.mxu0 0.0
        %2275 = vmatpush1.msra.mxu0 0.0
        %2276 = vmatprep.subr.mxu0 0.0
        %2277 = vmatpush1.msra.mxu0 0.0
        %2278 = vmatprep.subr.mxu0 0.0
        %2279 = vmatpush1.msra.mxu0 0.0
        %2280 = vmatprep.subr.mxu0 0.0
        %2281 = vmatpush1.msra.mxu0 0.0
        %2282 = vmatprep.subr.mxu0 0.0
        %2283 = vmatpush1.msra.mxu0 0.0
        %2284 = vmatprep.subr.mxu0 0.0
        %2285 = vmatpush1.msra.mxu0 0.0
        %2286 = vmatprep.subr.mxu0 0.0
        %2287 = vmatpush1.msra.mxu0 0.0
        %2288 = vmatprep.subr.mxu0 0.0
        %2289 = vmatpush1.msra.mxu0 0.0
        %2290 = vmatprep.subr.mxu0 0.0
        %2291 = vmatpush1.msra.mxu0 0.0
        %2292 = vmatprep.subr.mxu0 0.0
        %2293 = vmatpush1.msra.mxu0 0.0
        %2294 = vmatprep.mubr.f32.mxu0 0.0
        %2295 = vmatmul.mubr.f32.gmra.mrb[0].mxu0 %v2205
        %v2296 = vpop.f32.mrb[0].mxu0
        %v2297 = vadd.f32 %v2228, %v2296
        %v2298 = vpop.f32.mrb[0].mxu0
        %2299 = vmatprep.mubr.f32.mxu0 0.0
        %2300 = vmatmul.mubr.f32.gmra.mrb[0].mxu0 %v2206
        %v2301 = vpop.f32.mrb[0].mxu0
        %v2302 = vadd.f32 %v2228, %v2301
        %v2303 = vpop.f32.mrb[0].mxu0
        %2304 = vdwg.mxu0
        %v2305 = vadd.f32 %v2053, %v2297
        %v2306 = vadd.f32 %v2054, %v2302
        %2307 = vst.msk [vmem:[#allocation2] sm:$0xff] %vm758, %v2305
        %2308 = vst.msk [vmem:[#allocation2 + $0x8] sm:$0xff] %vm758, %v2306
        %p2309 = scmp.eq.s32.totalorder %s37, 1
        // Predicated region
        $region97: #{tpu_custom_call.1} parent=91 // pred_check
          %p2310 = pneg %p2309
        $region98: #{tpu_custom_call.1} parent=91 // pred_check_branch
          %2312 = sbr.rel (%p2310) target = $region100
        $region99: #{tpu_custom_call.1} parent=91 // pred_region
          %s2313 = sld [smem:[#allocation4]]
          %s2314 = scalar_lea.vmem [#allocation2], %s2313
          %v2315 = vld [vmem:[%s2314] sm:$0x1]
          %s2316 = sld [smem:[#allocation4 + $0x1]]
          %s2317 = sadd.s32 %s2316, 8
          %s2318 = scalar_lea.vmem [#allocation2], %s2317
          %v2319 = vld [vmem:[%s2318] sm:$0x1]
          %v2321 = vrot.slane %v2319, 7
          %vm2323 = vcmask 1040384
          %v2324 = vsel %vm2323, %v2315, %v2321
          %v2325 = vld [vmem:[%s16] sm:$0x1]
          %v2326 = vld [vmem:[%s17] sm:$0x1]
          %vm2327 = vcmask 254976
          %v2328 = vsel %vm2327, %v2324, 0.0
          %2329 = vadd.xlane.f32.xlu0 %v2328
          %v2330 = vpop.xlane.xlu0 %2329
          %v2331 = vmul.f32 %v2330, %v765
          %v2332 = vsub.f32 %v2324, %v2331
          %v2333 = vmul.f32 %v2332, %v2332
          %v2334 = vsel %vm2327, %v2333, 0.0
          %2335 = vadd.xlane.f32.xlu0 %v2334
          %v2336 = vpop.xlane.xlu0 %2335
          %v2337 = vmul.f32 %v2336, %v765
          %v2338 = vadd.f32 %v2337, 1e-05
          %v2339 = vrsqrt.pop %v2338
          %v2340 = vmul.f32 %v2332, %v2339
          %v2342 = vlaneseq
          %v2343 = vshrl.u32 %v2342, 7
          %v2344 = vsub.s32 0, %v2343
          %v2345 = vrot.slane %v2325, %v2344
          %v2347 = vmul.f32 %v2340, %v2345
          %v2349 = vlaneseq
          %v2350 = vshrl.u32 %v2349, 7
          %v2351 = vsub.s32 0, %v2350
          %v2352 = vrot.slane %v2326, %v2351
          %v2354 = vadd.f32 %v2347, %v2352
          %v2355 = vld [vmem:[%s18] sm:$0xff]
          %v2356 = vld [vmem:[%s18 + $0x8] sm:$0xff]
          %v2357 = vld [vmem:[%s18 + $0x10] sm:$0xff]
          %v2358 = vld [vmem:[%s18 + $0x18] sm:$0xff]
          %v2360 = vsel %vm758, %v2354, 0
          %2362 = vmatprep.subr.mxu0 0.0
          %2363 = vmatpush1.msra.mxu0 %v2355
          %2364 = vmatprep.subr.mxu0 0.0
          %2365 = vmatpush1.msra.mxu0 %v2356
          %2366 = vmatprep.subr.mxu0 0.0
          %2367 = vmatpush1.msra.mxu0 %v2357
          %2368 = vmatprep.subr.mxu0 0.0
          %2369 = vmatpush1.msra.mxu0 %v2358
          %2370 = vmatprep.subr.mxu0 0.0
          %2371 = vmatpush1.msra.mxu0 0.0
          %2372 = vmatprep.subr.mxu0 0.0
          %2373 = vmatpush1.msra.mxu0 0.0
          %2374 = vmatprep.subr.mxu0 0.0
          %2375 = vmatpush1.msra.mxu0 0.0
          %2376 = vmatprep.subr.mxu0 0.0
          %2377 = vmatpush1.msra.mxu0 0.0
          %2378 = vmatprep.subr.mxu0 0.0
          %2379 = vmatpush1.msra.mxu0 0.0
          %2380 = vmatprep.subr.mxu0 0.0
          %2381 = vmatpush1.msra.mxu0 0.0
          %2382 = vmatprep.subr.mxu0 0.0
          %2383 = vmatpush1.msra.mxu0 0.0
          %2384 = vmatprep.subr.mxu0 0.0
          %2385 = vmatpush1.msra.mxu0 0.0
          %2386 = vmatprep.subr.mxu0 0.0
          %2387 = vmatpush1.msra.mxu0 0.0
          %2388 = vmatprep.subr.mxu0 0.0
          %2389 = vmatpush1.msra.mxu0 0.0
          %2390 = vmatprep.subr.mxu0 0.0
          %2391 = vmatpush1.msra.mxu0 0.0
          %2392 = vmatprep.subr.mxu0 0.0
          %2393 = vmatpush1.msra.mxu0 0.0
          %2394 = vmatprep.subr.mxu0 0.0
          %2395 = vmatpush1.msra.mxu0 0.0
          %2396 = vmatprep.subr.mxu0 0.0
          %2397 = vmatpush1.msra.mxu0 0.0
          %2398 = vmatprep.subr.mxu0 0.0
          %2399 = vmatpush1.msra.mxu0 0.0
          %2400 = vmatprep.subr.mxu0 0.0
          %2401 = vmatpush1.msra.mxu0 0.0
          %2402 = vmatprep.subr.mxu0 0.0
          %2403 = vmatpush1.msra.mxu0 0.0
          %2404 = vmatprep.subr.mxu0 0.0
          %2405 = vmatpush1.msra.mxu0 0.0
          %2406 = vmatprep.subr.mxu0 0.0
          %2407 = vmatpush1.msra.mxu0 0.0
          %2408 = vmatprep.subr.mxu0 0.0
          %2409 = vmatpush1.msra.mxu0 0.0
          %2410 = vmatprep.subr.mxu0 0.0
          %2411 = vmatpush1.msra.mxu0 0.0
          %2412 = vmatprep.subr.mxu0 0.0
          %2413 = vmatpush1.msra.mxu0 0.0
          %2414 = vmatprep.subr.mxu0 0.0
          %2415 = vmatpush1.msra.mxu0 0.0
          %2416 = vmatprep.subr.mxu0 0.0
          %2417 = vmatpush1.msra.mxu0 0.0
          %2418 = vmatprep.subr.mxu0 0.0
          %2419 = vmatpush1.msra.mxu0 0.0
          %2420 = vmatprep.subr.mxu0 0.0
          %2421 = vmatpush1.msra.mxu0 0.0
          %2422 = vmatprep.subr.mxu0 0.0
          %2423 = vmatpush1.msra.mxu0 0.0
          %2424 = vmatprep.subr.mxu0 0.0
          %2425 = vmatpush1.msra.mxu0 0.0
          %2426 = vmatprep.mubr.f32.mxu0 0.0
          %2427 = vmatmul.mubr.f32.gmra.mrb[0].mxu0 %v2360
          %v2428 = vpop.f32.mrb[0].mxu0
          %v2429 = vadd.f32 0.0, %v2428
          %v2430 = vpop.f32.mrb[0].mxu0
          %2431 = vdwg.mxu0
          %2432 = vst.msk [vmem:[#allocation5] sm:$0x3] %vm2327, %v2429
        $region100: #{tpu_custom_call.1} parent=91 // pred_fallthru
          _
        // Predicated region
        $region101: #{tpu_custom_call.1} parent=91 // pred_check
          %p2433 = pneg %p488
        $region102: #{tpu_custom_call.1} parent=91 // pred_check_branch
          %2435 = sbr.rel (%p2433) target = $region104
        $region103: #{tpu_custom_call.1} parent=91 // pred_region
          %s2437 = ssub.s32 32, 32
          %2438 = vsyncadd [#allocation6], %s2437
          %s2440 = sshll.u32 [#allocation5], 4
          %s2441 = int_to_ptr.vmem [resolvable:$true] %s2440
          %2443 = dma.vmem_to_hbm [thread:$0]  %s2441, 32, %s19, [#allocation6]
        $region104: #{tpu_custom_call.1} parent=91 // pred_fallthru
          _
        // Predicated region
        $region105: #{tpu_custom_call.1} parent=91 // pred_check
          %p2444 = pneg %p488
        $region106: #{tpu_custom_call.1} parent=91 // pred_check_branch
          %2446 = sbr.rel (%p2444) target = $region108
        $region107: #{tpu_custom_call.1} parent=91 // pred_region
          %2447 = dma.done [#allocation6], 32
        $region108: #{tpu_custom_call.1} parent=91 // pred_fallthru
          _
      $region92: #{tpu_custom_call.1} parent=5 // pred_fallthru
        _
      %p2448 = scmp.le.s32.totalorder 2, %s32
      // Predicated region
      $region109: #{tpu_custom_call.1} parent=5 // pred_check
        %p2449 = pneg %p2448
      $region110: #{tpu_custom_call.1} parent=5 // pred_check_branch
        %2451 = sbr.rel (%p2449) target = $region112
      $region111: #{tpu_custom_call.1} parent=5 // pred_region
        %s2452 = ssub.s32 %s32, 2
      $region112: #{tpu_custom_call.1} parent=5 // pred_fallthru
        _
    $region6: #{tpu_custom_call.1} parent=1 // loop_footer
      %s36 = sadd.s32 1, %s32
    $region7: #{tpu_custom_call.1} parent=1 // loop_footer_branch
      %31 = sbr.rel target = $region3
    $region8: #{tpu_custom_call.1} parent=1 // loop_exit
      _
    %2453 = vsyncpa [#allocation6], 1
    %s2454 = scalar_lea.sflag [#allocation6], 1
    %2455 = vsyncpa %s2454, 1

</llo_original>
